<compile_context>
chip_gen: v7x
topology: tpu7x:2x2x1
jax: 0.10.0
libtpu: 0.0.40
codegen_flags: <defaults>
</compile_context>

<pallas_src>
import functools

import jax
import jax.numpy as jnp
from jax.experimental import pallas as pl
from jax.experimental.pallas import tpu as pltpu

EPS = 1e-5

# Tap order t = (dy+1)*3 + (dx+1)  ==  kh*3 + kw of the HWIO weight.
_OFFSETS = tuple((dy, dx) for dy in (-1, 0, 1) for dx in (-1, 0, 1))


def _resblock_kernel(x_ref, mask_ref, w1_ref, g1_ref, b1_ref,
                     w2_ref, g2_ref, b2_ref, out_ref, *, N, C, W):
    NC, HW = x_ref.shape          # NC = C*N rows (channel-major), HW lanes
    x = x_ref[...]                # (NC, HW) f32, row = c*N + n

    # --- 3x3 "same" conv, vectorized over output channels -----------------
    # A cyclic sublane roll by k*N maps row (co*N + n) onto row
    # (((co+k)%C)*N + n): same batch, channel rotated by k.  Hence
    #   acc[co*N+n, p] = sum_{t,k} W[t, (co+k)%C, co] * roll_{kN}(tap_t)[.,p]
    # i.e. 9*C full-width (NC,HW) MACs per conv; the per-(t,k) weight is a
    # precomputed (NC,1) column read from VMEM.
    def conv3x3(h, wcol_ref):
        acc = jnp.zeros((NC, HW), jnp.float32)
        for t, (dy, dx) in enumerate(_OFFSETS):
            s = dy * W + dx
            if s == 0:
                tap = h                                      # center: no shift/mask
            else:
                # rolled[p] = h[p + s]; wrap-around is killed by the mask,
                # which arrives pre-broadcast to (NC, HW) and is shared by
                # both convs (no in-kernel reshape/broadcast per use).
                tap = pltpu.roll(h, shift=(-s) % HW, axis=1) * mask_ref[t]
            for k in range(C):
                sk = tap if k == 0 else pltpu.roll(
                    tap, shift=(-k * N) % NC, axis=0)
                acc = acc + wcol_ref[t * C + k] * sk         # (NC,1)*(NC,HW)
        return acc

    # --- training-mode BatchNorm (stats over (N,H,W), biased variance) ----
    # Per-channel reduction in the packed layout: lane-reduce to (NC,1), then
    # combine the N rows of each channel with tiny sublane rolls + selects.
    n_idx = jax.lax.broadcasted_iota(jnp.int32, (NC, 1), 0) % N

    def channel_mean(v):
        rs = jnp.sum(v, axis=1, keepdims=True)               # (NC, 1)
        tot = rs
        for j in range(1, N):
            fwd = pltpu.roll(rs, shift=(-j) % NC, axis=0)       # rs[r + j]
            bwd = pltpu.roll(rs, shift=(N - j) % NC, axis=0)    # rs[r + j - N]
            tot = tot + jnp.where(n_idx + j < N, fwd, bwd)
        return tot * (1.0 / (N * HW))

    def batchnorm(h, g_ref, b_ref):
        mean = channel_mean(h)                 # two-pass: matches reference
        hc = h - mean
        var = channel_mean(hc * hc)
        scale = g_ref[...] * jax.lax.rsqrt(var + EPS)        # (NC, 1)
        return hc * scale + b_ref[...]

    # conv1 -> bn1 -> relu -> conv2 -> bn2
    h1 = jnp.maximum(batchnorm(conv3x3(x, w1_ref), g1_ref, b1_ref), 0.0)
    h2 = batchnorm(conv3x3(h1, w2_ref), g2_ref, b2_ref)

    # residual add + ReLU: full (8,128)-tiled, unmasked lane-dense store.
    out_ref[...] = jnp.maximum(x + h2, 0.0)


def _tap_masks(H, W):
    """(9, H*W) float32 0/1 masks: validity of each 3x3 tap (zero padding)."""
    ys, xs = jnp.meshgrid(jnp.arange(H), jnp.arange(W), indexing="ij")
    rows = []
    for dy, dx in _OFFSETS:
        valid = ((ys + dy >= 0) & (ys + dy < H) &
                 (xs + dx >= 0) & (xs + dx < W))
        rows.append(valid.reshape(-1))
    return jnp.stack(rows).astype(jnp.float32)


def _prep_conv_weights(w_hwio, N, C):
    """(3,3,Cin,Cout) HWIO -> (9*C, N*C, 1) per-(tap, channel-offset) columns.

    col[t*C + k][co*N + n] = w[t, (co+k) % C, co]   (independent of n)
    """
    wt = w_hwio.reshape(9, C, C).astype(jnp.float32)          # [t, ci, co]
    co = jnp.arange(C)
    cols = [wt[:, (co + k) % C, co] for k in range(C)]        # each (9, C)
    wkc = jnp.stack(cols, axis=1)                             # (9, k, co)
    wkc = jnp.repeat(wkc, N, axis=2)                          # (9, k, co*N+n)
    return wkc.reshape(9 * C, N * C, 1)


def residual_block(x_nchw, params):
    """x_nchw: (N, C, H, W) float32 (PyTorch layout). Returns (N, C, H, W)."""
    w1, g1, b1, w2, g2, b2 = params       # w*: (3,3,C,C) HWIO ; g*, b*: (C,)
    N, C, H, W = x_nchw.shape
    HW, NC = H * W, N * C

    # Channel-major packing: row = c*N + n, lanes = H*W.  With N*C = 8 and
    # H*W = 256 this fills all 8 sublanes and a 128-multiple lane width.
    x_p = jnp.transpose(x_nchw, (1, 0, 2, 3)).reshape(NC, HW).astype(jnp.float32)

    mask_b = jnp.broadcast_to(_tap_masks(H, W)[:, None, :], (9, NC, HW))
    w1c = _prep_conv_weights(w1, N, C)
    w2c = _prep_conv_weights(w2, N, C)
    g1c = jnp.repeat(g1.astype(jnp.float32), N).reshape(NC, 1)
    b1c = jnp.repeat(b1.astype(jnp.float32), N).reshape(NC, 1)
    g2c = jnp.repeat(g2.astype(jnp.float32), N).reshape(NC, 1)
    b2c = jnp.repeat(b2.astype(jnp.float32), N).reshape(NC, 1)

    flops = (2 * 2 * 9 * C * NC * HW      # conv MACs (both convs)
             + 2 * 8 * NC * HW            # tap masking
             + 2 * 8 * NC * HW)           # BN / ReLU / residual, roughly
    bytes_accessed = 4 * (2 * NC * HW + 9 * NC * HW + 2 * 9 * C * NC + 4 * NC)

    def full(shape):
        return pl.BlockSpec(shape, lambda: (0,) * len(shape))

    out = pl.pallas_call(
        functools.partial(_resblock_kernel, N=N, C=C, W=W),
        out_shape=jax.ShapeDtypeStruct((NC, HW), jnp.float32),
        in_specs=[
            full((NC, HW)),             # x (packed)
            full((9, NC, HW)),          # pre-broadcast tap masks
            full((9 * C, NC, 1)), full((NC, 1)), full((NC, 1)),   # conv1/bn1
            full((9 * C, NC, 1)), full((NC, 1)), full((NC, 1)),   # conv2/bn2
        ],
        out_specs=full((NC, HW)),
        # Working set < 1 MiB: rely on the default scoped-VMEM limit so the
        # same code is safe on v7x (64 MiB physical VMEM) and v5e/v6e.
        cost_estimate=pl.CostEstimate(
            flops=flops, transcendentals=2 * C, bytes_accessed=bytes_accessed),
    )(x_p, mask_b, w1c, g1c, b1c, w2c, g2c, b2c)

    return jnp.transpose(out.reshape(C, N, H, W), (1, 0, 2, 3))


def make_params(key, n_channel):
    k1, k2, k3, k4, k5, k6 = jax.random.split(key, 6)
    c = n_channel
    w1 = 0.1 * jax.random.normal(k1, (3, 3, c, c), jnp.float32)   # HWIO
    w2 = 0.1 * jax.random.normal(k2, (3, 3, c, c), jnp.float32)   # HWIO
    g1 = 1.0 + 0.1 * jax.random.normal(k3, (c,), jnp.float32)     # BN1 gamma
    b1 = 0.1 * jax.random.normal(k4, (c,), jnp.float32)           # BN1 beta
    g2 = 1.0 + 0.1 * jax.random.normal(k5, (c,), jnp.float32)     # BN2 gamma
    b2 = 0.1 * jax.random.normal(k6, (c,), jnp.float32)           # BN2 beta
    return (w1, g1, b1, w2, g2, b2)


def reference_forward(x_nchw, params):
    """Pure-JAX reference mirroring the PyTorch module (training-mode BN)."""
    w1, g1, b1, w2, g2, b2 = params
    x = jnp.transpose(x_nchw, (0, 2, 3, 1))

    def conv(h, w):
        return jax.lax.conv_general_dilated(
            h, w, window_strides=(1, 1), padding="SAME",
            dimension_numbers=("NHWC", "HWIO", "NHWC"),
            precision=jax.lax.Precision.HIGHEST)

    def bn(h, g, b):
        mean = jnp.mean(h, axis=(0, 1, 2), keepdims=True)
        var = jnp.mean((h - mean) ** 2, axis=(0, 1, 2), keepdims=True)
        return (h - mean) * jax.lax.rsqrt(var + EPS) * g.reshape(1, 1, 1, -1) \
            + b.reshape(1, 1, 1, -1)

    h = jax.nn.relu(bn(conv(x, w1), g1, b1))
    h = bn(conv(h, w2), g2, b2)
    out = jax.nn.relu(x + h)
    return jnp.transpose(out, (0, 3, 1, 2))


if __name__ == "__main__":
    key = jax.random.PRNGKey(0)
    kx, kp = jax.random.split(key)

    N, C, H, W = 2, 4, 16, 16
    x = jax.random.normal(kx, (N, C, H, W), jnp.float32)
    params = make_params(kp, C)

    out = residual_block(x, params)
    out = jax.block_until_ready(out)

    ref = reference_forward(x, params)
    assert out.shape == (N, C, H, W)
    assert jnp.allclose(out, ref, rtol=2e-5, atol=2e-5), "mismatch vs reference"

    # TODO(synk): BatchNorm running-stat updates (module training state) are
    # side effects with no bearing on the forward output; not modeled here.
    print("KERNEL_OK")
</pallas_src>

<mosaic_0001>
module attributes {stable_mosaic.version = 11 : i64} {
  func.func @_resblock_kernel(%arg0: memref<8x256xf32, #tpu.memory_space<vmem>>, %arg1: memref<9x8x256xf32, #tpu.memory_space<vmem>>, %arg2: memref<36x8x1xf32, #tpu.memory_space<vmem>>, %arg3: memref<8x1xf32, #tpu.memory_space<vmem>>, %arg4: memref<8x1xf32, #tpu.memory_space<vmem>>, %arg5: memref<36x8x1xf32, #tpu.memory_space<vmem>>, %arg6: memref<8x1xf32, #tpu.memory_space<vmem>>, %arg7: memref<8x1xf32, #tpu.memory_space<vmem>>, %arg8: memref<8x256xf32, #tpu.memory_space<vmem>>) attributes {dimension_semantics = [], scalar_prefetch = 0 : i64, scratch_operands = 0 : i64, tpu.core_type = #tpu.core_type<tc>} {
    %c0 = arith.constant 0 : index
    %c0_0 = arith.constant 0 : index
    %0 = vector.load %arg0[%c0, %c0_0] : memref<8x256xf32, #tpu.memory_space<vmem>>, vector<8x256xf32>
    %1 = tpu.iota {dimensions = array<i32: 0>} : vector<8x1xi32>
    %c2_i32 = arith.constant 2 : i32
    %c0_i32 = arith.constant 0 : i32
    %2 = arith.cmpi eq, %c2_i32, %c0_i32 : i32
    %c1_i32 = arith.constant 1 : i32
    %3 = arith.select %2, %c1_i32, %c2_i32 : i32
    %4 = vector.broadcast %3 : i32 to vector<8x1xi32>
    %5 = arith.remsi %1, %4 : vector<8x1xi32>
    %c0_i32_1 = arith.constant 0 : i32
    %6 = vector.broadcast %c0_i32_1 : i32 to vector<8x1xi32>
    %7 = arith.cmpi ne, %5, %6 : vector<8x1xi32>
    %c0_i32_2 = arith.constant 0 : i32
    %8 = vector.broadcast %c0_i32_2 : i32 to vector<8x1xi32>
    %9 = arith.cmpi slt, %5, %8 : vector<8x1xi32>
    %c0_i32_3 = arith.constant 0 : i32
    %10 = arith.cmpi slt, %3, %c0_i32_3 : i32
    %11 = vector.broadcast %10 : i1 to vector<8x1xi1>
    %12 = vector.broadcast %11 : vector<8x1xi1> to vector<8x1xi1>
    %13 = arith.xori %9, %12 : vector<8x1xi1>
    %14 = arith.andi %13, %7 : vector<8x1xi1>
    %15 = vector.broadcast %3 : i32 to vector<8x1xi32>
    %16 = arith.addi %5, %15 : vector<8x1xi32>
    %17 = arith.select %14, %16, %5 : vector<8x1xi1>, vector<8x1xi32>
    %cst = arith.constant 0.000000e+00 : f32
    %18 = vector.broadcast %cst : f32 to vector<8x256xf32>
    %c17_i32 = arith.constant 17 : i32
    %19 = tpu.dynamic_rotate %0 by %c17_i32 dim 1 : vector<8x256xf32>, i32 -> vector<8x256xf32>
    %c0_4 = arith.constant 0 : index
    %c0_5 = arith.constant 0 : index
    %c0_6 = arith.constant 0 : index
    %20 = vector.load %arg1[%c0_4, %c0_5, %c0_6] : memref<9x8x256xf32, #tpu.memory_space<vmem>>, vector<1x8x256xf32>
    %21 = vector.shape_cast %20 : vector<1x8x256xf32> to vector<8x256xf32>
    %22 = arith.mulf %19, %21 : vector<8x256xf32>
    %c0_7 = arith.constant 0 : index
    %c0_8 = arith.constant 0 : index
    %c0_9 = arith.constant 0 : index
    %23 = vector.load %arg2[%c0_7, %c0_8, %c0_9] : memref<36x8x1xf32, #tpu.memory_space<vmem>>, vector<1x8x1xf32>
    %24 = vector.shape_cast %23 : vector<1x8x1xf32> to vector<8x1xf32>
    %25 = vector.broadcast %24 : vector<8x1xf32> to vector<8x256xf32>
    %26 = arith.mulf %25, %22 : vector<8x256xf32>
    %27 = arith.addf %18, %26 : vector<8x256xf32>
    %c6_i32 = arith.constant 6 : i32
    %28 = tpu.dynamic_rotate %22 by %c6_i32 dim 0 : vector<8x256xf32>, i32 -> vector<8x256xf32>
    %c1 = arith.constant 1 : index
    %c0_10 = arith.constant 0 : index
    %c0_11 = arith.constant 0 : index
    %29 = vector.load %arg2[%c1, %c0_10, %c0_11] : memref<36x8x1xf32, #tpu.memory_space<vmem>>, vector<1x8x1xf32>
    %30 = vector.shape_cast %29 : vector<1x8x1xf32> to vector<8x1xf32>
    %31 = vector.broadcast %30 : vector<8x1xf32> to vector<8x256xf32>
    %32 = arith.mulf %31, %28 : vector<8x256xf32>
    %33 = arith.addf %27, %32 : vector<8x256xf32>
    %c4_i32 = arith.constant 4 : i32
    %34 = tpu.dynamic_rotate %22 by %c4_i32 dim 0 : vector<8x256xf32>, i32 -> vector<8x256xf32>
    %c2 = arith.constant 2 : index
    %c0_12 = arith.constant 0 : index
    %c0_13 = arith.constant 0 : index
    %35 = vector.load %arg2[%c2, %c0_12, %c0_13] : memref<36x8x1xf32, #tpu.memory_space<vmem>>, vector<1x8x1xf32>
    %36 = vector.shape_cast %35 : vector<1x8x1xf32> to vector<8x1xf32>
    %37 = vector.broadcast %36 : vector<8x1xf32> to vector<8x256xf32>
    %38 = arith.mulf %37, %34 : vector<8x256xf32>
    %39 = arith.addf %33, %38 : vector<8x256xf32>
    %c2_i32_14 = arith.constant 2 : i32
    %40 = tpu.dynamic_rotate %22 by %c2_i32_14 dim 0 : vector<8x256xf32>, i32 -> vector<8x256xf32>
    %c3 = arith.constant 3 : index
    %c0_15 = arith.constant 0 : index
    %c0_16 = arith.constant 0 : index
    %41 = vector.load %arg2[%c3, %c0_15, %c0_16] : memref<36x8x1xf32, #tpu.memory_space<vmem>>, vector<1x8x1xf32>
    %42 = vector.shape_cast %41 : vector<1x8x1xf32> to vector<8x1xf32>
    %43 = vector.broadcast %42 : vector<8x1xf32> to vector<8x256xf32>
    %44 = arith.mulf %43, %40 : vector<8x256xf32>
    %45 = arith.addf %39, %44 : vector<8x256xf32>
    %c16_i32 = arith.constant 16 : i32
    %46 = tpu.dynamic_rotate %0 by %c16_i32 dim 1 : vector<8x256xf32>, i32 -> vector<8x256xf32>
    %c1_17 = arith.constant 1 : index
    %c0_18 = arith.constant 0 : index
    %c0_19 = arith.constant 0 : index
    %47 = vector.load %arg1[%c1_17, %c0_18, %c0_19] : memref<9x8x256xf32, #tpu.memory_space<vmem>>, vector<1x8x256xf32>
    %48 = vector.shape_cast %47 : vector<1x8x256xf32> to vector<8x256xf32>
    %49 = arith.mulf %46, %48 : vector<8x256xf32>
    %c4 = arith.constant 4 : index
    %c0_20 = arith.constant 0 : index
    %c0_21 = arith.constant 0 : index
    %50 = vector.load %arg2[%c4, %c0_20, %c0_21] : memref<36x8x1xf32, #tpu.memory_space<vmem>>, vector<1x8x1xf32>
    %51 = vector.shape_cast %50 : vector<1x8x1xf32> to vector<8x1xf32>
    %52 = vector.broadcast %51 : vector<8x1xf32> to vector<8x256xf32>
    %53 = arith.mulf %52, %49 : vector<8x256xf32>
    %54 = arith.addf %45, %53 : vector<8x256xf32>
    %c6_i32_22 = arith.constant 6 : i32
    %55 = tpu.dynamic_rotate %49 by %c6_i32_22 dim 0 : vector<8x256xf32>, i32 -> vector<8x256xf32>
    %c5 = arith.constant 5 : index
    %c0_23 = arith.constant 0 : index
    %c0_24 = arith.constant 0 : index
    %56 = vector.load %arg2[%c5, %c0_23, %c0_24] : memref<36x8x1xf32, #tpu.memory_space<vmem>>, vector<1x8x1xf32>
    %57 = vector.shape_cast %56 : vector<1x8x1xf32> to vector<8x1xf32>
    %58 = vector.broadcast %57 : vector<8x1xf32> to vector<8x256xf32>
    %59 = arith.mulf %58, %55 : vector<8x256xf32>
    %60 = arith.addf %54, %59 : vector<8x256xf32>
    %c4_i32_25 = arith.constant 4 : i32
    %61 = tpu.dynamic_rotate %49 by %c4_i32_25 dim 0 : vector<8x256xf32>, i32 -> vector<8x256xf32>
    %c6 = arith.constant 6 : index
    %c0_26 = arith.constant 0 : index
    %c0_27 = arith.constant 0 : index
    %62 = vector.load %arg2[%c6, %c0_26, %c0_27] : memref<36x8x1xf32, #tpu.memory_space<vmem>>, vector<1x8x1xf32>
    %63 = vector.shape_cast %62 : vector<1x8x1xf32> to vector<8x1xf32>
    %64 = vector.broadcast %63 : vector<8x1xf32> to vector<8x256xf32>
    %65 = arith.mulf %64, %61 : vector<8x256xf32>
    %66 = arith.addf %60, %65 : vector<8x256xf32>
    %c2_i32_28 = arith.constant 2 : i32
    %67 = tpu.dynamic_rotate %49 by %c2_i32_28 dim 0 : vector<8x256xf32>, i32 -> vector<8x256xf32>
    %c7 = arith.constant 7 : index
    %c0_29 = arith.constant 0 : index
    %c0_30 = arith.constant 0 : index
    %68 = vector.load %arg2[%c7, %c0_29, %c0_30] : memref<36x8x1xf32, #tpu.memory_space<vmem>>, vector<1x8x1xf32>
    %69 = vector.shape_cast %68 : vector<1x8x1xf32> to vector<8x1xf32>
    %70 = vector.broadcast %69 : vector<8x1xf32> to vector<8x256xf32>
    %71 = arith.mulf %70, %67 : vector<8x256xf32>
    %72 = arith.addf %66, %71 : vector<8x256xf32>
    %c15_i32 = arith.constant 15 : i32
    %73 = tpu.dynamic_rotate %0 by %c15_i32 dim 1 : vector<8x256xf32>, i32 -> vector<8x256xf32>
    %c2_31 = arith.constant 2 : index
    %c0_32 = arith.constant 0 : index
    %c0_33 = arith.constant 0 : index
    %74 = vector.load %arg1[%c2_31, %c0_32, %c0_33] : memref<9x8x256xf32, #tpu.memory_space<vmem>>, vector<1x8x256xf32>
    %75 = vector.shape_cast %74 : vector<1x8x256xf32> to vector<8x256xf32>
    %76 = arith.mulf %73, %75 : vector<8x256xf32>
    %c8 = arith.constant 8 : index
    %c0_34 = arith.constant 0 : index
    %c0_35 = arith.constant 0 : index
    %77 = vector.load %arg2[%c8, %c0_34, %c0_35] : memref<36x8x1xf32, #tpu.memory_space<vmem>>, vector<1x8x1xf32>
    %78 = vector.shape_cast %77 : vector<1x8x1xf32> to vector<8x1xf32>
    %79 = vector.broadcast %78 : vector<8x1xf32> to vector<8x256xf32>
    %80 = arith.mulf %79, %76 : vector<8x256xf32>
    %81 = arith.addf %72, %80 : vector<8x256xf32>
    %c6_i32_36 = arith.constant 6 : i32
    %82 = tpu.dynamic_rotate %76 by %c6_i32_36 dim 0 : vector<8x256xf32>, i32 -> vector<8x256xf32>
    %c9 = arith.constant 9 : index
    %c0_37 = arith.constant 0 : index
    %c0_38 = arith.constant 0 : index
    %83 = vector.load %arg2[%c9, %c0_37, %c0_38] : memref<36x8x1xf32, #tpu.memory_space<vmem>>, vector<1x8x1xf32>
    %84 = vector.shape_cast %83 : vector<1x8x1xf32> to vector<8x1xf32>
    %85 = vector.broadcast %84 : vector<8x1xf32> to vector<8x256xf32>
    %86 = arith.mulf %85, %82 : vector<8x256xf32>
    %87 = arith.addf %81, %86 : vector<8x256xf32>
    %c4_i32_39 = arith.constant 4 : i32
    %88 = tpu.dynamic_rotate %76 by %c4_i32_39 dim 0 : vector<8x256xf32>, i32 -> vector<8x256xf32>
    %c10 = arith.constant 10 : index
    %c0_40 = arith.constant 0 : index
    %c0_41 = arith.constant 0 : index
    %89 = vector.load %arg2[%c10, %c0_40, %c0_41] : memref<36x8x1xf32, #tpu.memory_space<vmem>>, vector<1x8x1xf32>
    %90 = vector.shape_cast %89 : vector<1x8x1xf32> to vector<8x1xf32>
    %91 = vector.broadcast %90 : vector<8x1xf32> to vector<8x256xf32>
    %92 = arith.mulf %91, %88 : vector<8x256xf32>
    %93 = arith.addf %87, %92 : vector<8x256xf32>
    %c2_i32_42 = arith.constant 2 : i32
    %94 = tpu.dynamic_rotate %76 by %c2_i32_42 dim 0 : vector<8x256xf32>, i32 -> vector<8x256xf32>
    %c11 = arith.constant 11 : index
    %c0_43 = arith.constant 0 : index
    %c0_44 = arith.constant 0 : index
    %95 = vector.load %arg2[%c11, %c0_43, %c0_44] : memref<36x8x1xf32, #tpu.memory_space<vmem>>, vector<1x8x1xf32>
    %96 = vector.shape_cast %95 : vector<1x8x1xf32> to vector<8x1xf32>
    %97 = vector.broadcast %96 : vector<8x1xf32> to vector<8x256xf32>
    %98 = arith.mulf %97, %94 : vector<8x256xf32>
    %99 = arith.addf %93, %98 : vector<8x256xf32>
    %c1_i32_45 = arith.constant 1 : i32
    %100 = tpu.dynamic_rotate %0 by %c1_i32_45 dim 1 : vector<8x256xf32>, i32 -> vector<8x256xf32>
    %c3_46 = arith.constant 3 : index
    %c0_47 = arith.constant 0 : index
    %c0_48 = arith.constant 0 : index
    %101 = vector.load %arg1[%c3_46, %c0_47, %c0_48] : memref<9x8x256xf32, #tpu.memory_space<vmem>>, vector<1x8x256xf32>
    %102 = vector.shape_cast %101 : vector<1x8x256xf32> to vector<8x256xf32>
    %103 = arith.mulf %100, %102 : vector<8x256xf32>
    %c12 = arith.constant 12 : index
    %c0_49 = arith.constant 0 : index
    %c0_50 = arith.constant 0 : index
    %104 = vector.load %arg2[%c12, %c0_49, %c0_50] : memref<36x8x1xf32, #tpu.memory_space<vmem>>, vector<1x8x1xf32>
    %105 = vector.shape_cast %104 : vector<1x8x1xf32> to vector<8x1xf32>
    %106 = vector.broadcast %105 : vector<8x1xf32> to vector<8x256xf32>
    %107 = arith.mulf %106, %103 : vector<8x256xf32>
    %108 = arith.addf %99, %107 : vector<8x256xf32>
    %c6_i32_51 = arith.constant 6 : i32
    %109 = tpu.dynamic_rotate %103 by %c6_i32_51 dim 0 : vector<8x256xf32>, i32 -> vector<8x256xf32>
    %c13 = arith.constant 13 : index
    %c0_52 = arith.constant 0 : index
    %c0_53 = arith.constant 0 : index
    %110 = vector.load %arg2[%c13, %c0_52, %c0_53] : memref<36x8x1xf32, #tpu.memory_space<vmem>>, vector<1x8x1xf32>
    %111 = vector.shape_cast %110 : vector<1x8x1xf32> to vector<8x1xf32>
    %112 = vector.broadcast %111 : vector<8x1xf32> to vector<8x256xf32>
    %113 = arith.mulf %112, %109 : vector<8x256xf32>
    %114 = arith.addf %108, %113 : vector<8x256xf32>
    %c4_i32_54 = arith.constant 4 : i32
    %115 = tpu.dynamic_rotate %103 by %c4_i32_54 dim 0 : vector<8x256xf32>, i32 -> vector<8x256xf32>
    %c14 = arith.constant 14 : index
    %c0_55 = arith.constant 0 : index
    %c0_56 = arith.constant 0 : index
    %116 = vector.load %arg2[%c14, %c0_55, %c0_56] : memref<36x8x1xf32, #tpu.memory_space<vmem>>, vector<1x8x1xf32>
    %117 = vector.shape_cast %116 : vector<1x8x1xf32> to vector<8x1xf32>
    %118 = vector.broadcast %117 : vector<8x1xf32> to vector<8x256xf32>
    %119 = arith.mulf %118, %115 : vector<8x256xf32>
    %120 = arith.addf %114, %119 : vector<8x256xf32>
    %c2_i32_57 = arith.constant 2 : i32
    %121 = tpu.dynamic_rotate %103 by %c2_i32_57 dim 0 : vector<8x256xf32>, i32 -> vector<8x256xf32>
    %c15 = arith.constant 15 : index
    %c0_58 = arith.constant 0 : index
    %c0_59 = arith.constant 0 : index
    %122 = vector.load %arg2[%c15, %c0_58, %c0_59] : memref<36x8x1xf32, #tpu.memory_space<vmem>>, vector<1x8x1xf32>
    %123 = vector.shape_cast %122 : vector<1x8x1xf32> to vector<8x1xf32>
    %124 = vector.broadcast %123 : vector<8x1xf32> to vector<8x256xf32>
    %125 = arith.mulf %124, %121 : vector<8x256xf32>
    %126 = arith.addf %120, %125 : vector<8x256xf32>
    %c16 = arith.constant 16 : index
    %c0_60 = arith.constant 0 : index
    %c0_61 = arith.constant 0 : index
    %127 = vector.load %arg2[%c16, %c0_60, %c0_61] : memref<36x8x1xf32, #tpu.memory_space<vmem>>, vector<1x8x1xf32>
    %128 = vector.shape_cast %127 : vector<1x8x1xf32> to vector<8x1xf32>
    %129 = vector.broadcast %128 : vector<8x1xf32> to vector<8x256xf32>
    %130 = arith.mulf %129, %0 : vector<8x256xf32>
    %131 = arith.addf %126, %130 : vector<8x256xf32>
    %c6_i32_62 = arith.constant 6 : i32
    %132 = tpu.dynamic_rotate %0 by %c6_i32_62 dim 0 : vector<8x256xf32>, i32 -> vector<8x256xf32>
    %c17 = arith.constant 17 : index
    %c0_63 = arith.constant 0 : index
    %c0_64 = arith.constant 0 : index
    %133 = vector.load %arg2[%c17, %c0_63, %c0_64] : memref<36x8x1xf32, #tpu.memory_space<vmem>>, vector<1x8x1xf32>
    %134 = vector.shape_cast %133 : vector<1x8x1xf32> to vector<8x1xf32>
    %135 = vector.broadcast %134 : vector<8x1xf32> to vector<8x256xf32>
    %136 = arith.mulf %135, %132 : vector<8x256xf32>
    %137 = arith.addf %131, %136 : vector<8x256xf32>
    %c4_i32_65 = arith.constant 4 : i32
    %138 = tpu.dynamic_rotate %0 by %c4_i32_65 dim 0 : vector<8x256xf32>, i32 -> vector<8x256xf32>
    %c18 = arith.constant 18 : index
    %c0_66 = arith.constant 0 : index
    %c0_67 = arith.constant 0 : index
    %139 = vector.load %arg2[%c18, %c0_66, %c0_67] : memref<36x8x1xf32, #tpu.memory_space<vmem>>, vector<1x8x1xf32>
    %140 = vector.shape_cast %139 : vector<1x8x1xf32> to vector<8x1xf32>
    %141 = vector.broadcast %140 : vector<8x1xf32> to vector<8x256xf32>
    %142 = arith.mulf %141, %138 : vector<8x256xf32>
    %143 = arith.addf %137, %142 : vector<8x256xf32>
    %c2_i32_68 = arith.constant 2 : i32
    %144 = tpu.dynamic_rotate %0 by %c2_i32_68 dim 0 : vector<8x256xf32>, i32 -> vector<8x256xf32>
    %c19 = arith.constant 19 : index
    %c0_69 = arith.constant 0 : index
    %c0_70 = arith.constant 0 : index
    %145 = vector.load %arg2[%c19, %c0_69, %c0_70] : memref<36x8x1xf32, #tpu.memory_space<vmem>>, vector<1x8x1xf32>
    %146 = vector.shape_cast %145 : vector<1x8x1xf32> to vector<8x1xf32>
    %147 = vector.broadcast %146 : vector<8x1xf32> to vector<8x256xf32>
    %148 = arith.mulf %147, %144 : vector<8x256xf32>
    %149 = arith.addf %143, %148 : vector<8x256xf32>
    %c255_i32 = arith.constant 255 : i32
    %150 = tpu.dynamic_rotate %0 by %c255_i32 dim 1 : vector<8x256xf32>, i32 -> vector<8x256xf32>
    %c5_71 = arith.constant 5 : index
    %c0_72 = arith.constant 0 : index
    %c0_73 = arith.constant 0 : index
    %151 = vector.load %arg1[%c5_71, %c0_72, %c0_73] : memref<9x8x256xf32, #tpu.memory_space<vmem>>, vector<1x8x256xf32>
    %152 = vector.shape_cast %151 : vector<1x8x256xf32> to vector<8x256xf32>
    %153 = arith.mulf %150, %152 : vector<8x256xf32>
    %c20 = arith.constant 20 : index
    %c0_74 = arith.constant 0 : index
    %c0_75 = arith.constant 0 : index
    %154 = vector.load %arg2[%c20, %c0_74, %c0_75] : memref<36x8x1xf32, #tpu.memory_space<vmem>>, vector<1x8x1xf32>
    %155 = vector.shape_cast %154 : vector<1x8x1xf32> to vector<8x1xf32>
    %156 = vector.broadcast %155 : vector<8x1xf32> to vector<8x256xf32>
    %157 = arith.mulf %156, %153 : vector<8x256xf32>
    %158 = arith.addf %149, %157 : vector<8x256xf32>
    %c6_i32_76 = arith.constant 6 : i32
    %159 = tpu.dynamic_rotate %153 by %c6_i32_76 dim 0 : vector<8x256xf32>, i32 -> vector<8x256xf32>
    %c21 = arith.constant 21 : index
    %c0_77 = arith.constant 0 : index
    %c0_78 = arith.constant 0 : index
    %160 = vector.load %arg2[%c21, %c0_77, %c0_78] : memref<36x8x1xf32, #tpu.memory_space<vmem>>, vector<1x8x1xf32>
    %161 = vector.shape_cast %160 : vector<1x8x1xf32> to vector<8x1xf32>
    %162 = vector.broadcast %161 : vector<8x1xf32> to vector<8x256xf32>
    %163 = arith.mulf %162, %159 : vector<8x256xf32>
    %164 = arith.addf %158, %163 : vector<8x256xf32>
    %c4_i32_79 = arith.constant 4 : i32
    %165 = tpu.dynamic_rotate %153 by %c4_i32_79 dim 0 : vector<8x256xf32>, i32 -> vector<8x256xf32>
    %c22 = arith.constant 22 : index
    %c0_80 = arith.constant 0 : index
    %c0_81 = arith.constant 0 : index
    %166 = vector.load %arg2[%c22, %c0_80, %c0_81] : memref<36x8x1xf32, #tpu.memory_space<vmem>>, vector<1x8x1xf32>
    %167 = vector.shape_cast %166 : vector<1x8x1xf32> to vector<8x1xf32>
    %168 = vector.broadcast %167 : vector<8x1xf32> to vector<8x256xf32>
    %169 = arith.mulf %168, %165 : vector<8x256xf32>
    %170 = arith.addf %164, %169 : vector<8x256xf32>
    %c2_i32_82 = arith.constant 2 : i32
    %171 = tpu.dynamic_rotate %153 by %c2_i32_82 dim 0 : vector<8x256xf32>, i32 -> vector<8x256xf32>
    %c23 = arith.constant 23 : index
    %c0_83 = arith.constant 0 : index
    %c0_84 = arith.constant 0 : index
    %172 = vector.load %arg2[%c23, %c0_83, %c0_84] : memref<36x8x1xf32, #tpu.memory_space<vmem>>, vector<1x8x1xf32>
    %173 = vector.shape_cast %172 : vector<1x8x1xf32> to vector<8x1xf32>
    %174 = vector.broadcast %173 : vector<8x1xf32> to vector<8x256xf32>
    %175 = arith.mulf %174, %171 : vector<8x256xf32>
    %176 = arith.addf %170, %175 : vector<8x256xf32>
    %c241_i32 = arith.constant 241 : i32
    %177 = tpu.dynamic_rotate %0 by %c241_i32 dim 1 : vector<8x256xf32>, i32 -> vector<8x256xf32>
    %c6_85 = arith.constant 6 : index
    %c0_86 = arith.constant 0 : index
    %c0_87 = arith.constant 0 : index
    %178 = vector.load %arg1[%c6_85, %c0_86, %c0_87] : memref<9x8x256xf32, #tpu.memory_space<vmem>>, vector<1x8x256xf32>
    %179 = vector.shape_cast %178 : vector<1x8x256xf32> to vector<8x256xf32>
    %180 = arith.mulf %177, %179 : vector<8x256xf32>
    %c24 = arith.constant 24 : index
    %c0_88 = arith.constant 0 : index
    %c0_89 = arith.constant 0 : index
    %181 = vector.load %arg2[%c24, %c0_88, %c0_89] : memref<36x8x1xf32, #tpu.memory_space<vmem>>, vector<1x8x1xf32>
    %182 = vector.shape_cast %181 : vector<1x8x1xf32> to vector<8x1xf32>
    %183 = vector.broadcast %182 : vector<8x1xf32> to vector<8x256xf32>
    %184 = arith.mulf %183, %180 : vector<8x256xf32>
    %185 = arith.addf %176, %184 : vector<8x256xf32>
    %c6_i32_90 = arith.constant 6 : i32
    %186 = tpu.dynamic_rotate %180 by %c6_i32_90 dim 0 : vector<8x256xf32>, i32 -> vector<8x256xf32>
    %c25 = arith.constant 25 : index
    %c0_91 = arith.constant 0 : index
    %c0_92 = arith.constant 0 : index
    %187 = vector.load %arg2[%c25, %c0_91, %c0_92] : memref<36x8x1xf32, #tpu.memory_space<vmem>>, vector<1x8x1xf32>
    %188 = vector.shape_cast %187 : vector<1x8x1xf32> to vector<8x1xf32>
    %189 = vector.broadcast %188 : vector<8x1xf32> to vector<8x256xf32>
    %190 = arith.mulf %189, %186 : vector<8x256xf32>
    %191 = arith.addf %185, %190 : vector<8x256xf32>
    %c4_i32_93 = arith.constant 4 : i32
    %192 = tpu.dynamic_rotate %180 by %c4_i32_93 dim 0 : vector<8x256xf32>, i32 -> vector<8x256xf32>
    %c26 = arith.constant 26 : index
    %c0_94 = arith.constant 0 : index
    %c0_95 = arith.constant 0 : index
    %193 = vector.load %arg2[%c26, %c0_94, %c0_95] : memref<36x8x1xf32, #tpu.memory_space<vmem>>, vector<1x8x1xf32>
    %194 = vector.shape_cast %193 : vector<1x8x1xf32> to vector<8x1xf32>
    %195 = vector.broadcast %194 : vector<8x1xf32> to vector<8x256xf32>
    %196 = arith.mulf %195, %192 : vector<8x256xf32>
    %197 = arith.addf %191, %196 : vector<8x256xf32>
    %c2_i32_96 = arith.constant 2 : i32
    %198 = tpu.dynamic_rotate %180 by %c2_i32_96 dim 0 : vector<8x256xf32>, i32 -> vector<8x256xf32>
    %c27 = arith.constant 27 : index
    %c0_97 = arith.constant 0 : index
    %c0_98 = arith.constant 0 : index
    %199 = vector.load %arg2[%c27, %c0_97, %c0_98] : memref<36x8x1xf32, #tpu.memory_space<vmem>>, vector<1x8x1xf32>
    %200 = vector.shape_cast %199 : vector<1x8x1xf32> to vector<8x1xf32>
    %201 = vector.broadcast %200 : vector<8x1xf32> to vector<8x256xf32>
    %202 = arith.mulf %201, %198 : vector<8x256xf32>
    %203 = arith.addf %197, %202 : vector<8x256xf32>
    %c240_i32 = arith.constant 240 : i32
    %204 = tpu.dynamic_rotate %0 by %c240_i32 dim 1 : vector<8x256xf32>, i32 -> vector<8x256xf32>
    %c7_99 = arith.constant 7 : index
    %c0_100 = arith.constant 0 : index
    %c0_101 = arith.constant 0 : index
    %205 = vector.load %arg1[%c7_99, %c0_100, %c0_101] : memref<9x8x256xf32, #tpu.memory_space<vmem>>, vector<1x8x256xf32>
    %206 = vector.shape_cast %205 : vector<1x8x256xf32> to vector<8x256xf32>
    %207 = arith.mulf %204, %206 : vector<8x256xf32>
    %c28 = arith.constant 28 : index
    %c0_102 = arith.constant 0 : index
    %c0_103 = arith.constant 0 : index
    %208 = vector.load %arg2[%c28, %c0_102, %c0_103] : memref<36x8x1xf32, #tpu.memory_space<vmem>>, vector<1x8x1xf32>
    %209 = vector.shape_cast %208 : vector<1x8x1xf32> to vector<8x1xf32>
    %210 = vector.broadcast %209 : vector<8x1xf32> to vector<8x256xf32>
    %211 = arith.mulf %210, %207 : vector<8x256xf32>
    %212 = arith.addf %203, %211 : vector<8x256xf32>
    %c6_i32_104 = arith.constant 6 : i32
    %213 = tpu.dynamic_rotate %207 by %c6_i32_104 dim 0 : vector<8x256xf32>, i32 -> vector<8x256xf32>
    %c29 = arith.constant 29 : index
    %c0_105 = arith.constant 0 : index
    %c0_106 = arith.constant 0 : index
    %214 = vector.load %arg2[%c29, %c0_105, %c0_106] : memref<36x8x1xf32, #tpu.memory_space<vmem>>, vector<1x8x1xf32>
    %215 = vector.shape_cast %214 : vector<1x8x1xf32> to vector<8x1xf32>
    %216 = vector.broadcast %215 : vector<8x1xf32> to vector<8x256xf32>
    %217 = arith.mulf %216, %213 : vector<8x256xf32>
    %218 = arith.addf %212, %217 : vector<8x256xf32>
    %c4_i32_107 = arith.constant 4 : i32
    %219 = tpu.dynamic_rotate %207 by %c4_i32_107 dim 0 : vector<8x256xf32>, i32 -> vector<8x256xf32>
    %c30 = arith.constant 30 : index
    %c0_108 = arith.constant 0 : index
    %c0_109 = arith.constant 0 : index
    %220 = vector.load %arg2[%c30, %c0_108, %c0_109] : memref<36x8x1xf32, #tpu.memory_space<vmem>>, vector<1x8x1xf32>
    %221 = vector.shape_cast %220 : vector<1x8x1xf32> to vector<8x1xf32>
    %222 = vector.broadcast %221 : vector<8x1xf32> to vector<8x256xf32>
    %223 = arith.mulf %222, %219 : vector<8x256xf32>
    %224 = arith.addf %218, %223 : vector<8x256xf32>
    %c2_i32_110 = arith.constant 2 : i32
    %225 = tpu.dynamic_rotate %207 by %c2_i32_110 dim 0 : vector<8x256xf32>, i32 -> vector<8x256xf32>
    %c31 = arith.constant 31 : index
    %c0_111 = arith.constant 0 : index
    %c0_112 = arith.constant 0 : index
    %226 = vector.load %arg2[%c31, %c0_111, %c0_112] : memref<36x8x1xf32, #tpu.memory_space<vmem>>, vector<1x8x1xf32>
    %227 = vector.shape_cast %226 : vector<1x8x1xf32> to vector<8x1xf32>
    %228 = vector.broadcast %227 : vector<8x1xf32> to vector<8x256xf32>
    %229 = arith.mulf %228, %225 : vector<8x256xf32>
    %230 = arith.addf %224, %229 : vector<8x256xf32>
    %c239_i32 = arith.constant 239 : i32
    %231 = tpu.dynamic_rotate %0 by %c239_i32 dim 1 : vector<8x256xf32>, i32 -> vector<8x256xf32>
    %c8_113 = arith.constant 8 : index
    %c0_114 = arith.constant 0 : index
    %c0_115 = arith.constant 0 : index
    %232 = vector.load %arg1[%c8_113, %c0_114, %c0_115] : memref<9x8x256xf32, #tpu.memory_space<vmem>>, vector<1x8x256xf32>
    %233 = vector.shape_cast %232 : vector<1x8x256xf32> to vector<8x256xf32>
    %234 = arith.mulf %231, %233 : vector<8x256xf32>
    %c32 = arith.constant 32 : index
    %c0_116 = arith.constant 0 : index
    %c0_117 = arith.constant 0 : index
    %235 = vector.load %arg2[%c32, %c0_116, %c0_117] : memref<36x8x1xf32, #tpu.memory_space<vmem>>, vector<1x8x1xf32>
    %236 = vector.shape_cast %235 : vector<1x8x1xf32> to vector<8x1xf32>
    %237 = vector.broadcast %236 : vector<8x1xf32> to vector<8x256xf32>
    %238 = arith.mulf %237, %234 : vector<8x256xf32>
    %239 = arith.addf %230, %238 : vector<8x256xf32>
    %c6_i32_118 = arith.constant 6 : i32
    %240 = tpu.dynamic_rotate %234 by %c6_i32_118 dim 0 : vector<8x256xf32>, i32 -> vector<8x256xf32>
    %c33 = arith.constant 33 : index
    %c0_119 = arith.constant 0 : index
    %c0_120 = arith.constant 0 : index
    %241 = vector.load %arg2[%c33, %c0_119, %c0_120] : memref<36x8x1xf32, #tpu.memory_space<vmem>>, vector<1x8x1xf32>
    %242 = vector.shape_cast %241 : vector<1x8x1xf32> to vector<8x1xf32>
    %243 = vector.broadcast %242 : vector<8x1xf32> to vector<8x256xf32>
    %244 = arith.mulf %243, %240 : vector<8x256xf32>
    %245 = arith.addf %239, %244 : vector<8x256xf32>
    %c4_i32_121 = arith.constant 4 : i32
    %246 = tpu.dynamic_rotate %234 by %c4_i32_121 dim 0 : vector<8x256xf32>, i32 -> vector<8x256xf32>
    %c34 = arith.constant 34 : index
    %c0_122 = arith.constant 0 : index
    %c0_123 = arith.constant 0 : index
    %247 = vector.load %arg2[%c34, %c0_122, %c0_123] : memref<36x8x1xf32, #tpu.memory_space<vmem>>, vector<1x8x1xf32>
    %248 = vector.shape_cast %247 : vector<1x8x1xf32> to vector<8x1xf32>
    %249 = vector.broadcast %248 : vector<8x1xf32> to vector<8x256xf32>
    %250 = arith.mulf %249, %246 : vector<8x256xf32>
    %251 = arith.addf %245, %250 : vector<8x256xf32>
    %c2_i32_124 = arith.constant 2 : i32
    %252 = tpu.dynamic_rotate %234 by %c2_i32_124 dim 0 : vector<8x256xf32>, i32 -> vector<8x256xf32>
    %c35 = arith.constant 35 : index
    %c0_125 = arith.constant 0 : index
    %c0_126 = arith.constant 0 : index
    %253 = vector.load %arg2[%c35, %c0_125, %c0_126] : memref<36x8x1xf32, #tpu.memory_space<vmem>>, vector<1x8x1xf32>
    %254 = vector.shape_cast %253 : vector<1x8x1xf32> to vector<8x1xf32>
    %255 = vector.broadcast %254 : vector<8x1xf32> to vector<8x256xf32>
    %256 = arith.mulf %255, %252 : vector<8x256xf32>
    %257 = arith.addf %251, %256 : vector<8x256xf32>
    %cst_127 = arith.constant dense<0.000000e+00> : vector<8xf32>
    %258 = vector.multi_reduction <add>, %257, %cst_127 [1] : vector<8x256xf32> to vector<8xf32>
    %259 = vector.shape_cast %258 : vector<8xf32> to vector<8x1xf32>
    %c7_i32 = arith.constant 7 : i32
    %260 = tpu.dynamic_rotate %259 by %c7_i32 dim 0 : vector<8x1xf32>, i32 -> vector<8x1xf32>
    %c1_i32_128 = arith.constant 1 : i32
    %261 = tpu.dynamic_rotate %259 by %c1_i32_128 dim 0 : vector<8x1xf32>, i32 -> vector<8x1xf32>
    %c1_i32_129 = arith.constant 1 : i32
    %262 = vector.broadcast %c1_i32_129 : i32 to vector<8x1xi32>
    %263 = arith.addi %17, %262 : vector<8x1xi32>
    %c2_i32_130 = arith.constant 2 : i32
    %264 = vector.broadcast %c2_i32_130 : i32 to vector<8x1xi32>
    %265 = arith.cmpi slt, %263, %264 : vector<8x1xi32>
    %266 = arith.select %265, %260, %261 : vector<8x1xi1>, vector<8x1xf32>
    %267 = arith.addf %259, %266 : vector<8x1xf32>
    %cst_131 = arith.constant 0.001953125 : f32
    %268 = vector.broadcast %cst_131 : f32 to vector<8x1xf32>
    %269 = arith.mulf %267, %268 : vector<8x1xf32>
    %270 = vector.broadcast %269 : vector<8x1xf32> to vector<8x256xf32>
    %271 = arith.subf %257, %270 : vector<8x256xf32>
    %272 = arith.mulf %271, %271 : vector<8x256xf32>
    %cst_132 = arith.constant dense<0.000000e+00> : vector<8xf32>
    %273 = vector.multi_reduction <add>, %272, %cst_132 [1] : vector<8x256xf32> to vector<8xf32>
    %274 = vector.shape_cast %273 : vector<8xf32> to vector<8x1xf32>
    %c7_i32_133 = arith.constant 7 : i32
    %275 = tpu.dynamic_rotate %274 by %c7_i32_133 dim 0 : vector<8x1xf32>, i32 -> vector<8x1xf32>
    %c1_i32_134 = arith.constant 1 : i32
    %276 = tpu.dynamic_rotate %274 by %c1_i32_134 dim 0 : vector<8x1xf32>, i32 -> vector<8x1xf32>
    %c1_i32_135 = arith.constant 1 : i32
    %277 = vector.broadcast %c1_i32_135 : i32 to vector<8x1xi32>
    %278 = arith.addi %17, %277 : vector<8x1xi32>
    %c2_i32_136 = arith.constant 2 : i32
    %279 = vector.broadcast %c2_i32_136 : i32 to vector<8x1xi32>
    %280 = arith.cmpi slt, %278, %279 : vector<8x1xi32>
    %281 = arith.select %280, %275, %276 : vector<8x1xi1>, vector<8x1xf32>
    %282 = arith.addf %274, %281 : vector<8x1xf32>
    %cst_137 = arith.constant 0.001953125 : f32
    %283 = vector.broadcast %cst_137 : f32 to vector<8x1xf32>
    %284 = arith.mulf %282, %283 : vector<8x1xf32>
    %c0_138 = arith.constant 0 : index
    %c0_139 = arith.constant 0 : index
    %285 = vector.load %arg3[%c0_138, %c0_139] : memref<8x1xf32, #tpu.memory_space<vmem>>, vector<8x1xf32>
    %cst_140 = arith.constant 9.99999974E-6 : f32
    %286 = vector.broadcast %cst_140 : f32 to vector<8x1xf32>
    %287 = arith.addf %284, %286 : vector<8x1xf32>
    %288 = math.rsqrt %287 : vector<8x1xf32>
    %289 = arith.mulf %285, %288 : vector<8x1xf32>
    %290 = vector.broadcast %289 : vector<8x1xf32> to vector<8x256xf32>
    %291 = arith.mulf %271, %290 : vector<8x256xf32>
    %c0_141 = arith.constant 0 : index
    %c0_142 = arith.constant 0 : index
    %292 = vector.load %arg4[%c0_141, %c0_142] : memref<8x1xf32, #tpu.memory_space<vmem>>, vector<8x1xf32>
    %293 = vector.broadcast %292 : vector<8x1xf32> to vector<8x256xf32>
    %294 = arith.addf %291, %293 : vector<8x256xf32>
    %cst_143 = arith.constant 0.000000e+00 : f32
    %295 = vector.broadcast %cst_143 : f32 to vector<8x256xf32>
    %296 = arith.maximumf %294, %295 : vector<8x256xf32>
    %cst_144 = arith.constant 0.000000e+00 : f32
    %297 = vector.broadcast %cst_144 : f32 to vector<8x256xf32>
    %c17_i32_145 = arith.constant 17 : i32
    %298 = tpu.dynamic_rotate %296 by %c17_i32_145 dim 1 : vector<8x256xf32>, i32 -> vector<8x256xf32>
    %c0_146 = arith.constant 0 : index
    %c0_147 = arith.constant 0 : index
    %c0_148 = arith.constant 0 : index
    %299 = vector.load %arg1[%c0_146, %c0_147, %c0_148] : memref<9x8x256xf32, #tpu.memory_space<vmem>>, vector<1x8x256xf32>
    %300 = vector.shape_cast %299 : vector<1x8x256xf32> to vector<8x256xf32>
    %301 = arith.mulf %298, %300 : vector<8x256xf32>
    %c0_149 = arith.constant 0 : index
    %c0_150 = arith.constant 0 : index
    %c0_151 = arith.constant 0 : index
    %302 = vector.load %arg5[%c0_149, %c0_150, %c0_151] : memref<36x8x1xf32, #tpu.memory_space<vmem>>, vector<1x8x1xf32>
    %303 = vector.shape_cast %302 : vector<1x8x1xf32> to vector<8x1xf32>
    %304 = vector.broadcast %303 : vector<8x1xf32> to vector<8x256xf32>
    %305 = arith.mulf %304, %301 : vector<8x256xf32>
    %306 = arith.addf %297, %305 : vector<8x256xf32>
    %c6_i32_152 = arith.constant 6 : i32
    %307 = tpu.dynamic_rotate %301 by %c6_i32_152 dim 0 : vector<8x256xf32>, i32 -> vector<8x256xf32>
    %c1_153 = arith.constant 1 : index
    %c0_154 = arith.constant 0 : index
    %c0_155 = arith.constant 0 : index
    %308 = vector.load %arg5[%c1_153, %c0_154, %c0_155] : memref<36x8x1xf32, #tpu.memory_space<vmem>>, vector<1x8x1xf32>
    %309 = vector.shape_cast %308 : vector<1x8x1xf32> to vector<8x1xf32>
    %310 = vector.broadcast %309 : vector<8x1xf32> to vector<8x256xf32>
    %311 = arith.mulf %310, %307 : vector<8x256xf32>
    %312 = arith.addf %306, %311 : vector<8x256xf32>
    %c4_i32_156 = arith.constant 4 : i32
    %313 = tpu.dynamic_rotate %301 by %c4_i32_156 dim 0 : vector<8x256xf32>, i32 -> vector<8x256xf32>
    %c2_157 = arith.constant 2 : index
    %c0_158 = arith.constant 0 : index
    %c0_159 = arith.constant 0 : index
    %314 = vector.load %arg5[%c2_157, %c0_158, %c0_159] : memref<36x8x1xf32, #tpu.memory_space<vmem>>, vector<1x8x1xf32>
    %315 = vector.shape_cast %314 : vector<1x8x1xf32> to vector<8x1xf32>
    %316 = vector.broadcast %315 : vector<8x1xf32> to vector<8x256xf32>
    %317 = arith.mulf %316, %313 : vector<8x256xf32>
    %318 = arith.addf %312, %317 : vector<8x256xf32>
    %c2_i32_160 = arith.constant 2 : i32
    %319 = tpu.dynamic_rotate %301 by %c2_i32_160 dim 0 : vector<8x256xf32>, i32 -> vector<8x256xf32>
    %c3_161 = arith.constant 3 : index
    %c0_162 = arith.constant 0 : index
    %c0_163 = arith.constant 0 : index
    %320 = vector.load %arg5[%c3_161, %c0_162, %c0_163] : memref<36x8x1xf32, #tpu.memory_space<vmem>>, vector<1x8x1xf32>
    %321 = vector.shape_cast %320 : vector<1x8x1xf32> to vector<8x1xf32>
    %322 = vector.broadcast %321 : vector<8x1xf32> to vector<8x256xf32>
    %323 = arith.mulf %322, %319 : vector<8x256xf32>
    %324 = arith.addf %318, %323 : vector<8x256xf32>
    %c16_i32_164 = arith.constant 16 : i32
    %325 = tpu.dynamic_rotate %296 by %c16_i32_164 dim 1 : vector<8x256xf32>, i32 -> vector<8x256xf32>
    %c1_165 = arith.constant 1 : index
    %c0_166 = arith.constant 0 : index
    %c0_167 = arith.constant 0 : index
    %326 = vector.load %arg1[%c1_165, %c0_166, %c0_167] : memref<9x8x256xf32, #tpu.memory_space<vmem>>, vector<1x8x256xf32>
    %327 = vector.shape_cast %326 : vector<1x8x256xf32> to vector<8x256xf32>
    %328 = arith.mulf %325, %327 : vector<8x256xf32>
    %c4_168 = arith.constant 4 : index
    %c0_169 = arith.constant 0 : index
    %c0_170 = arith.constant 0 : index
    %329 = vector.load %arg5[%c4_168, %c0_169, %c0_170] : memref<36x8x1xf32, #tpu.memory_space<vmem>>, vector<1x8x1xf32>
    %330 = vector.shape_cast %329 : vector<1x8x1xf32> to vector<8x1xf32>
    %331 = vector.broadcast %330 : vector<8x1xf32> to vector<8x256xf32>
    %332 = arith.mulf %331, %328 : vector<8x256xf32>
    %333 = arith.addf %324, %332 : vector<8x256xf32>
    %c6_i32_171 = arith.constant 6 : i32
    %334 = tpu.dynamic_rotate %328 by %c6_i32_171 dim 0 : vector<8x256xf32>, i32 -> vector<8x256xf32>
    %c5_172 = arith.constant 5 : index
    %c0_173 = arith.constant 0 : index
    %c0_174 = arith.constant 0 : index
    %335 = vector.load %arg5[%c5_172, %c0_173, %c0_174] : memref<36x8x1xf32, #tpu.memory_space<vmem>>, vector<1x8x1xf32>
    %336 = vector.shape_cast %335 : vector<1x8x1xf32> to vector<8x1xf32>
    %337 = vector.broadcast %336 : vector<8x1xf32> to vector<8x256xf32>
    %338 = arith.mulf %337, %334 : vector<8x256xf32>
    %339 = arith.addf %333, %338 : vector<8x256xf32>
    %c4_i32_175 = arith.constant 4 : i32
    %340 = tpu.dynamic_rotate %328 by %c4_i32_175 dim 0 : vector<8x256xf32>, i32 -> vector<8x256xf32>
    %c6_176 = arith.constant 6 : index
    %c0_177 = arith.constant 0 : index
    %c0_178 = arith.constant 0 : index
    %341 = vector.load %arg5[%c6_176, %c0_177, %c0_178] : memref<36x8x1xf32, #tpu.memory_space<vmem>>, vector<1x8x1xf32>
    %342 = vector.shape_cast %341 : vector<1x8x1xf32> to vector<8x1xf32>
    %343 = vector.broadcast %342 : vector<8x1xf32> to vector<8x256xf32>
    %344 = arith.mulf %343, %340 : vector<8x256xf32>
    %345 = arith.addf %339, %344 : vector<8x256xf32>
    %c2_i32_179 = arith.constant 2 : i32
    %346 = tpu.dynamic_rotate %328 by %c2_i32_179 dim 0 : vector<8x256xf32>, i32 -> vector<8x256xf32>
    %c7_180 = arith.constant 7 : index
    %c0_181 = arith.constant 0 : index
    %c0_182 = arith.constant 0 : index
    %347 = vector.load %arg5[%c7_180, %c0_181, %c0_182] : memref<36x8x1xf32, #tpu.memory_space<vmem>>, vector<1x8x1xf32>
    %348 = vector.shape_cast %347 : vector<1x8x1xf32> to vector<8x1xf32>
    %349 = vector.broadcast %348 : vector<8x1xf32> to vector<8x256xf32>
    %350 = arith.mulf %349, %346 : vector<8x256xf32>
    %351 = arith.addf %345, %350 : vector<8x256xf32>
    %c15_i32_183 = arith.constant 15 : i32
    %352 = tpu.dynamic_rotate %296 by %c15_i32_183 dim 1 : vector<8x256xf32>, i32 -> vector<8x256xf32>
    %c2_184 = arith.constant 2 : index
    %c0_185 = arith.constant 0 : index
    %c0_186 = arith.constant 0 : index
    %353 = vector.load %arg1[%c2_184, %c0_185, %c0_186] : memref<9x8x256xf32, #tpu.memory_space<vmem>>, vector<1x8x256xf32>
    %354 = vector.shape_cast %353 : vector<1x8x256xf32> to vector<8x256xf32>
    %355 = arith.mulf %352, %354 : vector<8x256xf32>
    %c8_187 = arith.constant 8 : index
    %c0_188 = arith.constant 0 : index
    %c0_189 = arith.constant 0 : index
    %356 = vector.load %arg5[%c8_187, %c0_188, %c0_189] : memref<36x8x1xf32, #tpu.memory_space<vmem>>, vector<1x8x1xf32>
    %357 = vector.shape_cast %356 : vector<1x8x1xf32> to vector<8x1xf32>
    %358 = vector.broadcast %357 : vector<8x1xf32> to vector<8x256xf32>
    %359 = arith.mulf %358, %355 : vector<8x256xf32>
    %360 = arith.addf %351, %359 : vector<8x256xf32>
    %c6_i32_190 = arith.constant 6 : i32
    %361 = tpu.dynamic_rotate %355 by %c6_i32_190 dim 0 : vector<8x256xf32>, i32 -> vector<8x256xf32>
    %c9_191 = arith.constant 9 : index
    %c0_192 = arith.constant 0 : index
    %c0_193 = arith.constant 0 : index
    %362 = vector.load %arg5[%c9_191, %c0_192, %c0_193] : memref<36x8x1xf32, #tpu.memory_space<vmem>>, vector<1x8x1xf32>
    %363 = vector.shape_cast %362 : vector<1x8x1xf32> to vector<8x1xf32>
    %364 = vector.broadcast %363 : vector<8x1xf32> to vector<8x256xf32>
    %365 = arith.mulf %364, %361 : vector<8x256xf32>
    %366 = arith.addf %360, %365 : vector<8x256xf32>
    %c4_i32_194 = arith.constant 4 : i32
    %367 = tpu.dynamic_rotate %355 by %c4_i32_194 dim 0 : vector<8x256xf32>, i32 -> vector<8x256xf32>
    %c10_195 = arith.constant 10 : index
    %c0_196 = arith.constant 0 : index
    %c0_197 = arith.constant 0 : index
    %368 = vector.load %arg5[%c10_195, %c0_196, %c0_197] : memref<36x8x1xf32, #tpu.memory_space<vmem>>, vector<1x8x1xf32>
    %369 = vector.shape_cast %368 : vector<1x8x1xf32> to vector<8x1xf32>
    %370 = vector.broadcast %369 : vector<8x1xf32> to vector<8x256xf32>
    %371 = arith.mulf %370, %367 : vector<8x256xf32>
    %372 = arith.addf %366, %371 : vector<8x256xf32>
    %c2_i32_198 = arith.constant 2 : i32
    %373 = tpu.dynamic_rotate %355 by %c2_i32_198 dim 0 : vector<8x256xf32>, i32 -> vector<8x256xf32>
    %c11_199 = arith.constant 11 : index
    %c0_200 = arith.constant 0 : index
    %c0_201 = arith.constant 0 : index
    %374 = vector.load %arg5[%c11_199, %c0_200, %c0_201] : memref<36x8x1xf32, #tpu.memory_space<vmem>>, vector<1x8x1xf32>
    %375 = vector.shape_cast %374 : vector<1x8x1xf32> to vector<8x1xf32>
    %376 = vector.broadcast %375 : vector<8x1xf32> to vector<8x256xf32>
    %377 = arith.mulf %376, %373 : vector<8x256xf32>
    %378 = arith.addf %372, %377 : vector<8x256xf32>
    %c1_i32_202 = arith.constant 1 : i32
    %379 = tpu.dynamic_rotate %296 by %c1_i32_202 dim 1 : vector<8x256xf32>, i32 -> vector<8x256xf32>
    %c3_203 = arith.constant 3 : index
    %c0_204 = arith.constant 0 : index
    %c0_205 = arith.constant 0 : index
    %380 = vector.load %arg1[%c3_203, %c0_204, %c0_205] : memref<9x8x256xf32, #tpu.memory_space<vmem>>, vector<1x8x256xf32>
    %381 = vector.shape_cast %380 : vector<1x8x256xf32> to vector<8x256xf32>
    %382 = arith.mulf %379, %381 : vector<8x256xf32>
    %c12_206 = arith.constant 12 : index
    %c0_207 = arith.constant 0 : index
    %c0_208 = arith.constant 0 : index
    %383 = vector.load %arg5[%c12_206, %c0_207, %c0_208] : memref<36x8x1xf32, #tpu.memory_space<vmem>>, vector<1x8x1xf32>
    %384 = vector.shape_cast %383 : vector<1x8x1xf32> to vector<8x1xf32>
    %385 = vector.broadcast %384 : vector<8x1xf32> to vector<8x256xf32>
    %386 = arith.mulf %385, %382 : vector<8x256xf32>
    %387 = arith.addf %378, %386 : vector<8x256xf32>
    %c6_i32_209 = arith.constant 6 : i32
    %388 = tpu.dynamic_rotate %382 by %c6_i32_209 dim 0 : vector<8x256xf32>, i32 -> vector<8x256xf32>
    %c13_210 = arith.constant 13 : index
    %c0_211 = arith.constant 0 : index
    %c0_212 = arith.constant 0 : index
    %389 = vector.load %arg5[%c13_210, %c0_211, %c0_212] : memref<36x8x1xf32, #tpu.memory_space<vmem>>, vector<1x8x1xf32>
    %390 = vector.shape_cast %389 : vector<1x8x1xf32> to vector<8x1xf32>
    %391 = vector.broadcast %390 : vector<8x1xf32> to vector<8x256xf32>
    %392 = arith.mulf %391, %388 : vector<8x256xf32>
    %393 = arith.addf %387, %392 : vector<8x256xf32>
    %c4_i32_213 = arith.constant 4 : i32
    %394 = tpu.dynamic_rotate %382 by %c4_i32_213 dim 0 : vector<8x256xf32>, i32 -> vector<8x256xf32>
    %c14_214 = arith.constant 14 : index
    %c0_215 = arith.constant 0 : index
    %c0_216 = arith.constant 0 : index
    %395 = vector.load %arg5[%c14_214, %c0_215, %c0_216] : memref<36x8x1xf32, #tpu.memory_space<vmem>>, vector<1x8x1xf32>
    %396 = vector.shape_cast %395 : vector<1x8x1xf32> to vector<8x1xf32>
    %397 = vector.broadcast %396 : vector<8x1xf32> to vector<8x256xf32>
    %398 = arith.mulf %397, %394 : vector<8x256xf32>
    %399 = arith.addf %393, %398 : vector<8x256xf32>
    %c2_i32_217 = arith.constant 2 : i32
    %400 = tpu.dynamic_rotate %382 by %c2_i32_217 dim 0 : vector<8x256xf32>, i32 -> vector<8x256xf32>
    %c15_218 = arith.constant 15 : index
    %c0_219 = arith.constant 0 : index
    %c0_220 = arith.constant 0 : index
    %401 = vector.load %arg5[%c15_218, %c0_219, %c0_220] : memref<36x8x1xf32, #tpu.memory_space<vmem>>, vector<1x8x1xf32>
    %402 = vector.shape_cast %401 : vector<1x8x1xf32> to vector<8x1xf32>
    %403 = vector.broadcast %402 : vector<8x1xf32> to vector<8x256xf32>
    %404 = arith.mulf %403, %400 : vector<8x256xf32>
    %405 = arith.addf %399, %404 : vector<8x256xf32>
    %c16_221 = arith.constant 16 : index
    %c0_222 = arith.constant 0 : index
    %c0_223 = arith.constant 0 : index
    %406 = vector.load %arg5[%c16_221, %c0_222, %c0_223] : memref<36x8x1xf32, #tpu.memory_space<vmem>>, vector<1x8x1xf32>
    %407 = vector.shape_cast %406 : vector<1x8x1xf32> to vector<8x1xf32>
    %408 = vector.broadcast %407 : vector<8x1xf32> to vector<8x256xf32>
    %409 = arith.mulf %408, %296 : vector<8x256xf32>
    %410 = arith.addf %405, %409 : vector<8x256xf32>
    %c6_i32_224 = arith.constant 6 : i32
    %411 = tpu.dynamic_rotate %296 by %c6_i32_224 dim 0 : vector<8x256xf32>, i32 -> vector<8x256xf32>
    %c17_225 = arith.constant 17 : index
    %c0_226 = arith.constant 0 : index
    %c0_227 = arith.constant 0 : index
    %412 = vector.load %arg5[%c17_225, %c0_226, %c0_227] : memref<36x8x1xf32, #tpu.memory_space<vmem>>, vector<1x8x1xf32>
    %413 = vector.shape_cast %412 : vector<1x8x1xf32> to vector<8x1xf32>
    %414 = vector.broadcast %413 : vector<8x1xf32> to vector<8x256xf32>
    %415 = arith.mulf %414, %411 : vector<8x256xf32>
    %416 = arith.addf %410, %415 : vector<8x256xf32>
    %c4_i32_228 = arith.constant 4 : i32
    %417 = tpu.dynamic_rotate %296 by %c4_i32_228 dim 0 : vector<8x256xf32>, i32 -> vector<8x256xf32>
    %c18_229 = arith.constant 18 : index
    %c0_230 = arith.constant 0 : index
    %c0_231 = arith.constant 0 : index
    %418 = vector.load %arg5[%c18_229, %c0_230, %c0_231] : memref<36x8x1xf32, #tpu.memory_space<vmem>>, vector<1x8x1xf32>
    %419 = vector.shape_cast %418 : vector<1x8x1xf32> to vector<8x1xf32>
    %420 = vector.broadcast %419 : vector<8x1xf32> to vector<8x256xf32>
    %421 = arith.mulf %420, %417 : vector<8x256xf32>
    %422 = arith.addf %416, %421 : vector<8x256xf32>
    %c2_i32_232 = arith.constant 2 : i32
    %423 = tpu.dynamic_rotate %296 by %c2_i32_232 dim 0 : vector<8x256xf32>, i32 -> vector<8x256xf32>
    %c19_233 = arith.constant 19 : index
    %c0_234 = arith.constant 0 : index
    %c0_235 = arith.constant 0 : index
    %424 = vector.load %arg5[%c19_233, %c0_234, %c0_235] : memref<36x8x1xf32, #tpu.memory_space<vmem>>, vector<1x8x1xf32>
    %425 = vector.shape_cast %424 : vector<1x8x1xf32> to vector<8x1xf32>
    %426 = vector.broadcast %425 : vector<8x1xf32> to vector<8x256xf32>
    %427 = arith.mulf %426, %423 : vector<8x256xf32>
    %428 = arith.addf %422, %427 : vector<8x256xf32>
    %c255_i32_236 = arith.constant 255 : i32
    %429 = tpu.dynamic_rotate %296 by %c255_i32_236 dim 1 : vector<8x256xf32>, i32 -> vector<8x256xf32>
    %c5_237 = arith.constant 5 : index
    %c0_238 = arith.constant 0 : index
    %c0_239 = arith.constant 0 : index
    %430 = vector.load %arg1[%c5_237, %c0_238, %c0_239] : memref<9x8x256xf32, #tpu.memory_space<vmem>>, vector<1x8x256xf32>
    %431 = vector.shape_cast %430 : vector<1x8x256xf32> to vector<8x256xf32>
    %432 = arith.mulf %429, %431 : vector<8x256xf32>
    %c20_240 = arith.constant 20 : index
    %c0_241 = arith.constant 0 : index
    %c0_242 = arith.constant 0 : index
    %433 = vector.load %arg5[%c20_240, %c0_241, %c0_242] : memref<36x8x1xf32, #tpu.memory_space<vmem>>, vector<1x8x1xf32>
    %434 = vector.shape_cast %433 : vector<1x8x1xf32> to vector<8x1xf32>
    %435 = vector.broadcast %434 : vector<8x1xf32> to vector<8x256xf32>
    %436 = arith.mulf %435, %432 : vector<8x256xf32>
    %437 = arith.addf %428, %436 : vector<8x256xf32>
    %c6_i32_243 = arith.constant 6 : i32
    %438 = tpu.dynamic_rotate %432 by %c6_i32_243 dim 0 : vector<8x256xf32>, i32 -> vector<8x256xf32>
    %c21_244 = arith.constant 21 : index
    %c0_245 = arith.constant 0 : index
    %c0_246 = arith.constant 0 : index
    %439 = vector.load %arg5[%c21_244, %c0_245, %c0_246] : memref<36x8x1xf32, #tpu.memory_space<vmem>>, vector<1x8x1xf32>
    %440 = vector.shape_cast %439 : vector<1x8x1xf32> to vector<8x1xf32>
    %441 = vector.broadcast %440 : vector<8x1xf32> to vector<8x256xf32>
    %442 = arith.mulf %441, %438 : vector<8x256xf32>
    %443 = arith.addf %437, %442 : vector<8x256xf32>
    %c4_i32_247 = arith.constant 4 : i32
    %444 = tpu.dynamic_rotate %432 by %c4_i32_247 dim 0 : vector<8x256xf32>, i32 -> vector<8x256xf32>
    %c22_248 = arith.constant 22 : index
    %c0_249 = arith.constant 0 : index
    %c0_250 = arith.constant 0 : index
    %445 = vector.load %arg5[%c22_248, %c0_249, %c0_250] : memref<36x8x1xf32, #tpu.memory_space<vmem>>, vector<1x8x1xf32>
    %446 = vector.shape_cast %445 : vector<1x8x1xf32> to vector<8x1xf32>
    %447 = vector.broadcast %446 : vector<8x1xf32> to vector<8x256xf32>
    %448 = arith.mulf %447, %444 : vector<8x256xf32>
    %449 = arith.addf %443, %448 : vector<8x256xf32>
    %c2_i32_251 = arith.constant 2 : i32
    %450 = tpu.dynamic_rotate %432 by %c2_i32_251 dim 0 : vector<8x256xf32>, i32 -> vector<8x256xf32>
    %c23_252 = arith.constant 23 : index
    %c0_253 = arith.constant 0 : index
    %c0_254 = arith.constant 0 : index
    %451 = vector.load %arg5[%c23_252, %c0_253, %c0_254] : memref<36x8x1xf32, #tpu.memory_space<vmem>>, vector<1x8x1xf32>
    %452 = vector.shape_cast %451 : vector<1x8x1xf32> to vector<8x1xf32>
    %453 = vector.broadcast %452 : vector<8x1xf32> to vector<8x256xf32>
    %454 = arith.mulf %453, %450 : vector<8x256xf32>
    %455 = arith.addf %449, %454 : vector<8x256xf32>
    %c241_i32_255 = arith.constant 241 : i32
    %456 = tpu.dynamic_rotate %296 by %c241_i32_255 dim 1 : vector<8x256xf32>, i32 -> vector<8x256xf32>
    %c6_256 = arith.constant 6 : index
    %c0_257 = arith.constant 0 : index
    %c0_258 = arith.constant 0 : index
    %457 = vector.load %arg1[%c6_256, %c0_257, %c0_258] : memref<9x8x256xf32, #tpu.memory_space<vmem>>, vector<1x8x256xf32>
    %458 = vector.shape_cast %457 : vector<1x8x256xf32> to vector<8x256xf32>
    %459 = arith.mulf %456, %458 : vector<8x256xf32>
    %c24_259 = arith.constant 24 : index
    %c0_260 = arith.constant 0 : index
    %c0_261 = arith.constant 0 : index
    %460 = vector.load %arg5[%c24_259, %c0_260, %c0_261] : memref<36x8x1xf32, #tpu.memory_space<vmem>>, vector<1x8x1xf32>
    %461 = vector.shape_cast %460 : vector<1x8x1xf32> to vector<8x1xf32>
    %462 = vector.broadcast %461 : vector<8x1xf32> to vector<8x256xf32>
    %463 = arith.mulf %462, %459 : vector<8x256xf32>
    %464 = arith.addf %455, %463 : vector<8x256xf32>
    %c6_i32_262 = arith.constant 6 : i32
    %465 = tpu.dynamic_rotate %459 by %c6_i32_262 dim 0 : vector<8x256xf32>, i32 -> vector<8x256xf32>
    %c25_263 = arith.constant 25 : index
    %c0_264 = arith.constant 0 : index
    %c0_265 = arith.constant 0 : index
    %466 = vector.load %arg5[%c25_263, %c0_264, %c0_265] : memref<36x8x1xf32, #tpu.memory_space<vmem>>, vector<1x8x1xf32>
    %467 = vector.shape_cast %466 : vector<1x8x1xf32> to vector<8x1xf32>
    %468 = vector.broadcast %467 : vector<8x1xf32> to vector<8x256xf32>
    %469 = arith.mulf %468, %465 : vector<8x256xf32>
    %470 = arith.addf %464, %469 : vector<8x256xf32>
    %c4_i32_266 = arith.constant 4 : i32
    %471 = tpu.dynamic_rotate %459 by %c4_i32_266 dim 0 : vector<8x256xf32>, i32 -> vector<8x256xf32>
    %c26_267 = arith.constant 26 : index
    %c0_268 = arith.constant 0 : index
    %c0_269 = arith.constant 0 : index
    %472 = vector.load %arg5[%c26_267, %c0_268, %c0_269] : memref<36x8x1xf32, #tpu.memory_space<vmem>>, vector<1x8x1xf32>
    %473 = vector.shape_cast %472 : vector<1x8x1xf32> to vector<8x1xf32>
    %474 = vector.broadcast %473 : vector<8x1xf32> to vector<8x256xf32>
    %475 = arith.mulf %474, %471 : vector<8x256xf32>
    %476 = arith.addf %470, %475 : vector<8x256xf32>
    %c2_i32_270 = arith.constant 2 : i32
    %477 = tpu.dynamic_rotate %459 by %c2_i32_270 dim 0 : vector<8x256xf32>, i32 -> vector<8x256xf32>
    %c27_271 = arith.constant 27 : index
    %c0_272 = arith.constant 0 : index
    %c0_273 = arith.constant 0 : index
    %478 = vector.load %arg5[%c27_271, %c0_272, %c0_273] : memref<36x8x1xf32, #tpu.memory_space<vmem>>, vector<1x8x1xf32>
    %479 = vector.shape_cast %478 : vector<1x8x1xf32> to vector<8x1xf32>
    %480 = vector.broadcast %479 : vector<8x1xf32> to vector<8x256xf32>
    %481 = arith.mulf %480, %477 : vector<8x256xf32>
    %482 = arith.addf %476, %481 : vector<8x256xf32>
    %c240_i32_274 = arith.constant 240 : i32
    %483 = tpu.dynamic_rotate %296 by %c240_i32_274 dim 1 : vector<8x256xf32>, i32 -> vector<8x256xf32>
    %c7_275 = arith.constant 7 : index
    %c0_276 = arith.constant 0 : index
    %c0_277 = arith.constant 0 : index
    %484 = vector.load %arg1[%c7_275, %c0_276, %c0_277] : memref<9x8x256xf32, #tpu.memory_space<vmem>>, vector<1x8x256xf32>
    %485 = vector.shape_cast %484 : vector<1x8x256xf32> to vector<8x256xf32>
    %486 = arith.mulf %483, %485 : vector<8x256xf32>
    %c28_278 = arith.constant 28 : index
    %c0_279 = arith.constant 0 : index
    %c0_280 = arith.constant 0 : index
    %487 = vector.load %arg5[%c28_278, %c0_279, %c0_280] : memref<36x8x1xf32, #tpu.memory_space<vmem>>, vector<1x8x1xf32>
    %488 = vector.shape_cast %487 : vector<1x8x1xf32> to vector<8x1xf32>
    %489 = vector.broadcast %488 : vector<8x1xf32> to vector<8x256xf32>
    %490 = arith.mulf %489, %486 : vector<8x256xf32>
    %491 = arith.addf %482, %490 : vector<8x256xf32>
    %c6_i32_281 = arith.constant 6 : i32
    %492 = tpu.dynamic_rotate %486 by %c6_i32_281 dim 0 : vector<8x256xf32>, i32 -> vector<8x256xf32>
    %c29_282 = arith.constant 29 : index
    %c0_283 = arith.constant 0 : index
    %c0_284 = arith.constant 0 : index
    %493 = vector.load %arg5[%c29_282, %c0_283, %c0_284] : memref<36x8x1xf32, #tpu.memory_space<vmem>>, vector<1x8x1xf32>
    %494 = vector.shape_cast %493 : vector<1x8x1xf32> to vector<8x1xf32>
    %495 = vector.broadcast %494 : vector<8x1xf32> to vector<8x256xf32>
    %496 = arith.mulf %495, %492 : vector<8x256xf32>
    %497 = arith.addf %491, %496 : vector<8x256xf32>
    %c4_i32_285 = arith.constant 4 : i32
    %498 = tpu.dynamic_rotate %486 by %c4_i32_285 dim 0 : vector<8x256xf32>, i32 -> vector<8x256xf32>
    %c30_286 = arith.constant 30 : index
    %c0_287 = arith.constant 0 : index
    %c0_288 = arith.constant 0 : index
    %499 = vector.load %arg5[%c30_286, %c0_287, %c0_288] : memref<36x8x1xf32, #tpu.memory_space<vmem>>, vector<1x8x1xf32>
    %500 = vector.shape_cast %499 : vector<1x8x1xf32> to vector<8x1xf32>
    %501 = vector.broadcast %500 : vector<8x1xf32> to vector<8x256xf32>
    %502 = arith.mulf %501, %498 : vector<8x256xf32>
    %503 = arith.addf %497, %502 : vector<8x256xf32>
    %c2_i32_289 = arith.constant 2 : i32
    %504 = tpu.dynamic_rotate %486 by %c2_i32_289 dim 0 : vector<8x256xf32>, i32 -> vector<8x256xf32>
    %c31_290 = arith.constant 31 : index
    %c0_291 = arith.constant 0 : index
    %c0_292 = arith.constant 0 : index
    %505 = vector.load %arg5[%c31_290, %c0_291, %c0_292] : memref<36x8x1xf32, #tpu.memory_space<vmem>>, vector<1x8x1xf32>
    %506 = vector.shape_cast %505 : vector<1x8x1xf32> to vector<8x1xf32>
    %507 = vector.broadcast %506 : vector<8x1xf32> to vector<8x256xf32>
    %508 = arith.mulf %507, %504 : vector<8x256xf32>
    %509 = arith.addf %503, %508 : vector<8x256xf32>
    %c239_i32_293 = arith.constant 239 : i32
    %510 = tpu.dynamic_rotate %296 by %c239_i32_293 dim 1 : vector<8x256xf32>, i32 -> vector<8x256xf32>
    %c8_294 = arith.constant 8 : index
    %c0_295 = arith.constant 0 : index
    %c0_296 = arith.constant 0 : index
    %511 = vector.load %arg1[%c8_294, %c0_295, %c0_296] : memref<9x8x256xf32, #tpu.memory_space<vmem>>, vector<1x8x256xf32>
    %512 = vector.shape_cast %511 : vector<1x8x256xf32> to vector<8x256xf32>
    %513 = arith.mulf %510, %512 : vector<8x256xf32>
    %c32_297 = arith.constant 32 : index
    %c0_298 = arith.constant 0 : index
    %c0_299 = arith.constant 0 : index
    %514 = vector.load %arg5[%c32_297, %c0_298, %c0_299] : memref<36x8x1xf32, #tpu.memory_space<vmem>>, vector<1x8x1xf32>
    %515 = vector.shape_cast %514 : vector<1x8x1xf32> to vector<8x1xf32>
    %516 = vector.broadcast %515 : vector<8x1xf32> to vector<8x256xf32>
    %517 = arith.mulf %516, %513 : vector<8x256xf32>
    %518 = arith.addf %509, %517 : vector<8x256xf32>
    %c6_i32_300 = arith.constant 6 : i32
    %519 = tpu.dynamic_rotate %513 by %c6_i32_300 dim 0 : vector<8x256xf32>, i32 -> vector<8x256xf32>
    %c33_301 = arith.constant 33 : index
    %c0_302 = arith.constant 0 : index
    %c0_303 = arith.constant 0 : index
    %520 = vector.load %arg5[%c33_301, %c0_302, %c0_303] : memref<36x8x1xf32, #tpu.memory_space<vmem>>, vector<1x8x1xf32>
    %521 = vector.shape_cast %520 : vector<1x8x1xf32> to vector<8x1xf32>
    %522 = vector.broadcast %521 : vector<8x1xf32> to vector<8x256xf32>
    %523 = arith.mulf %522, %519 : vector<8x256xf32>
    %524 = arith.addf %518, %523 : vector<8x256xf32>
    %c4_i32_304 = arith.constant 4 : i32
    %525 = tpu.dynamic_rotate %513 by %c4_i32_304 dim 0 : vector<8x256xf32>, i32 -> vector<8x256xf32>
    %c34_305 = arith.constant 34 : index
    %c0_306 = arith.constant 0 : index
    %c0_307 = arith.constant 0 : index
    %526 = vector.load %arg5[%c34_305, %c0_306, %c0_307] : memref<36x8x1xf32, #tpu.memory_space<vmem>>, vector<1x8x1xf32>
    %527 = vector.shape_cast %526 : vector<1x8x1xf32> to vector<8x1xf32>
    %528 = vector.broadcast %527 : vector<8x1xf32> to vector<8x256xf32>
    %529 = arith.mulf %528, %525 : vector<8x256xf32>
    %530 = arith.addf %524, %529 : vector<8x256xf32>
    %c2_i32_308 = arith.constant 2 : i32
    %531 = tpu.dynamic_rotate %513 by %c2_i32_308 dim 0 : vector<8x256xf32>, i32 -> vector<8x256xf32>
    %c35_309 = arith.constant 35 : index
    %c0_310 = arith.constant 0 : index
    %c0_311 = arith.constant 0 : index
    %532 = vector.load %arg5[%c35_309, %c0_310, %c0_311] : memref<36x8x1xf32, #tpu.memory_space<vmem>>, vector<1x8x1xf32>
    %533 = vector.shape_cast %532 : vector<1x8x1xf32> to vector<8x1xf32>
    %534 = vector.broadcast %533 : vector<8x1xf32> to vector<8x256xf32>
    %535 = arith.mulf %534, %531 : vector<8x256xf32>
    %536 = arith.addf %530, %535 : vector<8x256xf32>
    %cst_312 = arith.constant dense<0.000000e+00> : vector<8xf32>
    %537 = vector.multi_reduction <add>, %536, %cst_312 [1] : vector<8x256xf32> to vector<8xf32>
    %538 = vector.shape_cast %537 : vector<8xf32> to vector<8x1xf32>
    %c7_i32_313 = arith.constant 7 : i32
    %539 = tpu.dynamic_rotate %538 by %c7_i32_313 dim 0 : vector<8x1xf32>, i32 -> vector<8x1xf32>
    %c1_i32_314 = arith.constant 1 : i32
    %540 = tpu.dynamic_rotate %538 by %c1_i32_314 dim 0 : vector<8x1xf32>, i32 -> vector<8x1xf32>
    %c1_i32_315 = arith.constant 1 : i32
    %541 = vector.broadcast %c1_i32_315 : i32 to vector<8x1xi32>
    %542 = arith.addi %17, %541 : vector<8x1xi32>
    %c2_i32_316 = arith.constant 2 : i32
    %543 = vector.broadcast %c2_i32_316 : i32 to vector<8x1xi32>
    %544 = arith.cmpi slt, %542, %543 : vector<8x1xi32>
    %545 = arith.select %544, %539, %540 : vector<8x1xi1>, vector<8x1xf32>
    %546 = arith.addf %538, %545 : vector<8x1xf32>
    %cst_317 = arith.constant 0.001953125 : f32
    %547 = vector.broadcast %cst_317 : f32 to vector<8x1xf32>
    %548 = arith.mulf %546, %547 : vector<8x1xf32>
    %549 = vector.broadcast %548 : vector<8x1xf32> to vector<8x256xf32>
    %550 = arith.subf %536, %549 : vector<8x256xf32>
    %551 = arith.mulf %550, %550 : vector<8x256xf32>
    %cst_318 = arith.constant dense<0.000000e+00> : vector<8xf32>
    %552 = vector.multi_reduction <add>, %551, %cst_318 [1] : vector<8x256xf32> to vector<8xf32>
    %553 = vector.shape_cast %552 : vector<8xf32> to vector<8x1xf32>
    %c7_i32_319 = arith.constant 7 : i32
    %554 = tpu.dynamic_rotate %553 by %c7_i32_319 dim 0 : vector<8x1xf32>, i32 -> vector<8x1xf32>
    %c1_i32_320 = arith.constant 1 : i32
    %555 = tpu.dynamic_rotate %553 by %c1_i32_320 dim 0 : vector<8x1xf32>, i32 -> vector<8x1xf32>
    %c1_i32_321 = arith.constant 1 : i32
    %556 = vector.broadcast %c1_i32_321 : i32 to vector<8x1xi32>
    %557 = arith.addi %17, %556 : vector<8x1xi32>
    %c2_i32_322 = arith.constant 2 : i32
    %558 = vector.broadcast %c2_i32_322 : i32 to vector<8x1xi32>
    %559 = arith.cmpi slt, %557, %558 : vector<8x1xi32>
    %560 = arith.select %559, %554, %555 : vector<8x1xi1>, vector<8x1xf32>
    %561 = arith.addf %553, %560 : vector<8x1xf32>
    %cst_323 = arith.constant 0.001953125 : f32
    %562 = vector.broadcast %cst_323 : f32 to vector<8x1xf32>
    %563 = arith.mulf %561, %562 : vector<8x1xf32>
    %c0_324 = arith.constant 0 : index
    %c0_325 = arith.constant 0 : index
    %564 = vector.load %arg6[%c0_324, %c0_325] : memref<8x1xf32, #tpu.memory_space<vmem>>, vector<8x1xf32>
    %cst_326 = arith.constant 9.99999974E-6 : f32
    %565 = vector.broadcast %cst_326 : f32 to vector<8x1xf32>
    %566 = arith.addf %563, %565 : vector<8x1xf32>
    %567 = math.rsqrt %566 : vector<8x1xf32>
    %568 = arith.mulf %564, %567 : vector<8x1xf32>
    %569 = vector.broadcast %568 : vector<8x1xf32> to vector<8x256xf32>
    %570 = arith.mulf %550, %569 : vector<8x256xf32>
    %c0_327 = arith.constant 0 : index
    %c0_328 = arith.constant 0 : index
    %571 = vector.load %arg7[%c0_327, %c0_328] : memref<8x1xf32, #tpu.memory_space<vmem>>, vector<8x1xf32>
    %572 = vector.broadcast %571 : vector<8x1xf32> to vector<8x256xf32>
    %573 = arith.addf %570, %572 : vector<8x256xf32>
    %574 = arith.addf %0, %573 : vector<8x256xf32>
    %cst_329 = arith.constant 0.000000e+00 : f32
    %575 = vector.broadcast %cst_329 : f32 to vector<8x256xf32>
    %576 = arith.maximumf %574, %575 : vector<8x256xf32>
    %c0_330 = arith.constant 0 : index
    %c0_331 = arith.constant 0 : index
    %577 = vector.load %arg8[%c0_330, %c0_331] : memref<8x256xf32, #tpu.memory_space<vmem>>, vector<8x256xf32>
    tpu.vector_store %arg8[%c0_330, %c0_331], %576 {strides = array<i32>} : memref<8x256xf32, #tpu.memory_space<vmem>>, vector<8x256xf32>,
    return
  }
}

</mosaic_0001>

<llo_original>
// kernel: tpu_custom_call.1
$region0: #{tpu_custom_call.1}
  #allocation0 [shape = 'u32[]', space=smem, size = 0x4, offset = 0x4, fixed_abs, tag = 'smem constant byte address 0x4 - core index']
  #allocation1 [shape = 'u32[144,128]{1,0:T(1,128)}', space=vmem, size = 0x12000, scoped, tag = 'internal scratch']
  %s0 = inlined_call_operand.vmem [shape: f32[8,256], index: 0, kind: input, shape index: {}]
  %s1 = inlined_call_operand.vmem [shape: f32[9,8,256], index: 1, kind: input, shape index: {}]
  %s2 = inlined_call_operand.vmem [shape: f32[36,8,1], index: 2, kind: input, shape index: {}]
  %s3 = inlined_call_operand.vmem [shape: f32[8,1], index: 3, kind: input, shape index: {}]
  %s4 = inlined_call_operand.vmem [shape: f32[8,1], index: 4, kind: input, shape index: {}]
  %s5 = inlined_call_operand.vmem [shape: f32[36,8,1], index: 5, kind: input, shape index: {}]
  %s6 = inlined_call_operand.vmem [shape: f32[8,1], index: 6, kind: input, shape index: {}]
  %s7 = inlined_call_operand.vmem [shape: f32[8,1], index: 7, kind: input, shape index: {}]
  %s8 = inlined_call_operand.hbm [shape: f32[8,256], index: 8, kind: output, shape index: {}]
  %s9 = sld [smem:[#allocation0]]
  $region42: #{tpu_custom_call.1} parent=0
    _
  %s11 = ssub.s32 1, %s9
  %s12 = scalar_select 0, %s11, %s9
  $region1: #{tpu_custom_call.1} parent=0
    #allocation2 [shape = 'u8[8192]{0}', space=vmem, size = 0x2000, scoped, tag = 'output window, operand 0, single buffered']
    #allocation3 [shape = 's32[1]{0}', space=sflag, size = 0x4, scoped, tag = 'scoped memory for tpu_custom_call.1']
    %13 = vsyncpa [#allocation3], 0
    // Predicated region
    $region2: #{tpu_custom_call.1} parent=1 // pred_check
      _
    $region3: #{tpu_custom_call.1} parent=1 // pred_check_branch
      %15 = sbr.rel (0) target = $region5
    $region4: #{tpu_custom_call.1} parent=1 // pred_region
      _
    $region5: #{tpu_custom_call.1} parent=1 // pred_fallthru
      _
    // Predicated region
    $region6: #{tpu_custom_call.1} parent=1 // pred_check
      _
    $region7: #{tpu_custom_call.1} parent=1 // pred_check_branch
      %17 = sbr.rel (0) target = $region9
    $region8: #{tpu_custom_call.1} parent=1 // pred_region
      _
    $region9: #{tpu_custom_call.1} parent=1 // pred_fallthru
      _
    // Predicated region
    $region10: #{tpu_custom_call.1} parent=1 // pred_check
      _
    $region11: #{tpu_custom_call.1} parent=1 // pred_check_branch
      %19 = sbr.rel (0) target = $region13
    $region12: #{tpu_custom_call.1} parent=1 // pred_region
      _
    $region13: #{tpu_custom_call.1} parent=1 // pred_fallthru
      _
    // Predicated region
    $region14: #{tpu_custom_call.1} parent=1 // pred_check
      _
    $region15: #{tpu_custom_call.1} parent=1 // pred_check_branch
      %21 = sbr.rel (0) target = $region17
    $region16: #{tpu_custom_call.1} parent=1 // pred_region
      _
    $region17: #{tpu_custom_call.1} parent=1 // pred_fallthru
      _
    // Predicated region
    $region18: #{tpu_custom_call.1} parent=1 // pred_check
      _
    $region19: #{tpu_custom_call.1} parent=1 // pred_check_branch
      %23 = sbr.rel (0) target = $region21
    $region20: #{tpu_custom_call.1} parent=1 // pred_region
      _
    $region21: #{tpu_custom_call.1} parent=1 // pred_fallthru
      _
    // Predicated region
    $region22: #{tpu_custom_call.1} parent=1 // pred_check
      _
    $region23: #{tpu_custom_call.1} parent=1 // pred_check_branch
      %25 = sbr.rel (0) target = $region25
    $region24: #{tpu_custom_call.1} parent=1 // pred_region
      _
    $region25: #{tpu_custom_call.1} parent=1 // pred_fallthru
      _
    // Predicated region
    $region26: #{tpu_custom_call.1} parent=1 // pred_check
      _
    $region27: #{tpu_custom_call.1} parent=1 // pred_check_branch
      %27 = sbr.rel (0) target = $region29
    $region28: #{tpu_custom_call.1} parent=1 // pred_region
      _
    $region29: #{tpu_custom_call.1} parent=1 // pred_fallthru
      _
    // Predicated region
    $region30: #{tpu_custom_call.1} parent=1 // pred_check
      _
    $region31: #{tpu_custom_call.1} parent=1 // pred_check_branch
      %29 = sbr.rel (0) target = $region33
    $region32: #{tpu_custom_call.1} parent=1 // pred_region
      _
    $region33: #{tpu_custom_call.1} parent=1 // pred_fallthru
      _
    %v30 = vld [vmem:[%s0] sm:$0xff]
    %v31 = vld [vmem:[%s0 + $0x8] sm:$0xff]
    %v32 = vlaneseq
    %v33 = vshrl.u32 %v32, 7
    %vm34 = vcmp.lt.s32.totalorder %v33, 0
    %v35 = vsub.s32 0, %v33
    %v36 = vsel %vm34, %v35, %v33
    %v37 = vshrl.u32 %v36, 1
    %v38 = vand.u32 %v36, 1
    %v39 = vsub.s32 0, %v38
    %v40 = vsel %vm34, %v39, %v38
    %vm41 = vcmp.ne.s32.totalorder %v40, 0
    %vm42 = vcmp.lt.s32.totalorder %v40, 0
    %vm43 = vmand %vm42, %vm41
    %v44 = vadd.s32 %v40, 2
    %v45 = vsel %vm43, %v44, %v40
    %46 = vrot.lane.b32.xlu0 %v30, 17
    %v47 = vpop.permute.xlu0 %46
    %48 = vrot.lane.b32.xlu0 %v31, 17
    %v49 = vpop.permute.xlu0 %48
    %v50 = vlaneseq
    %v51 = vand.u32 %v50, 127
    %vm52 = vcmp.lt.s32.totalorder %v51, 17
    %v53 = vsel %vm52, %v47, %v49
    %v54 = vsel %vm52, %v49, %v47
    %v55 = vld [vmem:[%s1] sm:$0xff]
    %v56 = vld [vmem:[%s1 + $0x8] sm:$0xff]
    %v57 = vmul.f32 %v54, %v55
    %v58 = vmul.f32 %v53, %v56
    %v59 = vld [vmem:[%s2] sm:$0xff]
    %61 = vset.pattern.permute.xlu0 0
    %62 = vperm.xlu0 %61, %v59
    %v63 = vpop.permute.xlu0 %62
    %v65 = vmul.f32 %v63, %v57
    %v66 = vmul.f32 %v63, %v58
    %v67 = vadd.f32 %v65, 0.0
    %v68 = vadd.f32 %v66, 0.0
    %v69 = vrot.slane %v57, 2
    %v70 = vrot.slane %v58, 2
    %s71 = scalar_lea.vmem %s2, 8
    %v72 = vld [vmem:[%s71] sm:$0xff]
    %74 = vset.pattern.permute.xlu0 0
    %75 = vperm.xlu0 %74, %v72
    %v76 = vpop.permute.xlu0 %75
    %v78 = vmul.f32 %v76, %v69
    %v79 = vmul.f32 %v76, %v70
    %v80 = vadd.f32 %v67, %v78
    %v81 = vadd.f32 %v68, %v79
    %v82 = vrot.slane %v57, 4
    %v83 = vrot.slane %v58, 4
    %s84 = scalar_lea.vmem %s2, 16
    %v85 = vld [vmem:[%s84] sm:$0xff]
    %87 = vset.pattern.permute.xlu0 0
    %88 = vperm.xlu0 %87, %v85
    %v89 = vpop.permute.xlu0 %88
    %v91 = vmul.f32 %v89, %v82
    %v92 = vmul.f32 %v89, %v83
    %v93 = vadd.f32 %v80, %v91
    %v94 = vadd.f32 %v81, %v92
    %v95 = vrot.slane %v57, 6
    %v96 = vrot.slane %v58, 6
    %s97 = scalar_lea.vmem %s2, 24
    %v98 = vld [vmem:[%s97] sm:$0xff]
    %100 = vset.pattern.permute.xlu0 0
    %101 = vperm.xlu0 %100, %v98
    %v102 = vpop.permute.xlu0 %101
    %v104 = vmul.f32 %v102, %v95
    %v105 = vmul.f32 %v102, %v96
    %v106 = vadd.f32 %v93, %v104
    %v107 = vadd.f32 %v94, %v105
    %108 = vrot.lane.b32.xlu0 %v30, 16
    %v109 = vpop.permute.xlu0 %108
    %110 = vrot.lane.b32.xlu0 %v31, 16
    %v111 = vpop.permute.xlu0 %110
    %vm112 = vcmp.lt.s32.totalorder %v51, 16
    %v113 = vsel %vm112, %v109, %v111
    %v114 = vsel %vm112, %v111, %v109
    %s115 = scalar_lea.vmem %s1, 16
    %v116 = vld [vmem:[%s115] sm:$0xff]
    %v117 = vld [vmem:[%s115 + $0x8] sm:$0xff]
    %v118 = vmul.f32 %v114, %v116
    %v119 = vmul.f32 %v113, %v117
    %s120 = scalar_lea.vmem %s2, 32
    %v121 = vld [vmem:[%s120] sm:$0xff]
    %123 = vset.pattern.permute.xlu0 0
    %124 = vperm.xlu0 %123, %v121
    %v125 = vpop.permute.xlu0 %124
    %v127 = vmul.f32 %v125, %v118
    %v128 = vmul.f32 %v125, %v119
    %v129 = vadd.f32 %v106, %v127
    %v130 = vadd.f32 %v107, %v128
    %v131 = vrot.slane %v118, 2
    %v132 = vrot.slane %v119, 2
    %s133 = scalar_lea.vmem %s2, 40
    %v134 = vld [vmem:[%s133] sm:$0xff]
    %136 = vset.pattern.permute.xlu0 0
    %137 = vperm.xlu0 %136, %v134
    %v138 = vpop.permute.xlu0 %137
    %v140 = vmul.f32 %v138, %v131
    %v141 = vmul.f32 %v138, %v132
    %v142 = vadd.f32 %v129, %v140
    %v143 = vadd.f32 %v130, %v141
    %v144 = vrot.slane %v118, 4
    %v145 = vrot.slane %v119, 4
    %s146 = scalar_lea.vmem %s2, 48
    %v147 = vld [vmem:[%s146] sm:$0xff]
    %149 = vset.pattern.permute.xlu0 0
    %150 = vperm.xlu0 %149, %v147
    %v151 = vpop.permute.xlu0 %150
    %v153 = vmul.f32 %v151, %v144
    %v154 = vmul.f32 %v151, %v145
    %v155 = vadd.f32 %v142, %v153
    %v156 = vadd.f32 %v143, %v154
    %v157 = vrot.slane %v118, 6
    %v158 = vrot.slane %v119, 6
    %s159 = scalar_lea.vmem %s2, 56
    %v160 = vld [vmem:[%s159] sm:$0xff]
    %162 = vset.pattern.permute.xlu0 0
    %163 = vperm.xlu0 %162, %v160
    %v164 = vpop.permute.xlu0 %163
    %v166 = vmul.f32 %v164, %v157
    %v167 = vmul.f32 %v164, %v158
    %v168 = vadd.f32 %v155, %v166
    %v169 = vadd.f32 %v156, %v167
    %170 = vrot.lane.b32.xlu0 %v30, 15
    %v171 = vpop.permute.xlu0 %170
    %172 = vrot.lane.b32.xlu0 %v31, 15
    %v173 = vpop.permute.xlu0 %172
    %vm174 = vcmp.lt.s32.totalorder %v51, 15
    %v175 = vsel %vm174, %v171, %v173
    %v176 = vsel %vm174, %v173, %v171
    %s177 = scalar_lea.vmem %s1, 32
    %v178 = vld [vmem:[%s177] sm:$0xff]
    %v179 = vld [vmem:[%s177 + $0x8] sm:$0xff]
    %v180 = vmul.f32 %v176, %v178
    %v181 = vmul.f32 %v175, %v179
    %s182 = scalar_lea.vmem %s2, 64
    %v183 = vld [vmem:[%s182] sm:$0xff]
    %185 = vset.pattern.permute.xlu0 0
    %186 = vperm.xlu0 %185, %v183
    %v187 = vpop.permute.xlu0 %186
    %v189 = vmul.f32 %v187, %v180
    %v190 = vmul.f32 %v187, %v181
    %v191 = vadd.f32 %v168, %v189
    %v192 = vadd.f32 %v169, %v190
    %v193 = vrot.slane %v180, 2
    %v194 = vrot.slane %v181, 2
    %s195 = scalar_lea.vmem %s2, 72
    %v196 = vld [vmem:[%s195] sm:$0xff]
    %198 = vset.pattern.permute.xlu0 0
    %199 = vperm.xlu0 %198, %v196
    %v200 = vpop.permute.xlu0 %199
    %v202 = vmul.f32 %v200, %v193
    %v203 = vmul.f32 %v200, %v194
    %v204 = vadd.f32 %v191, %v202
    %v205 = vadd.f32 %v192, %v203
    %v206 = vrot.slane %v180, 4
    %v207 = vrot.slane %v181, 4
    %s208 = scalar_lea.vmem %s2, 80
    %v209 = vld [vmem:[%s208] sm:$0xff]
    %211 = vset.pattern.permute.xlu0 0
    %212 = vperm.xlu0 %211, %v209
    %v213 = vpop.permute.xlu0 %212
    %v215 = vmul.f32 %v213, %v206
    %v216 = vmul.f32 %v213, %v207
    %v217 = vadd.f32 %v204, %v215
    %v218 = vadd.f32 %v205, %v216
    %v219 = vrot.slane %v180, 6
    %v220 = vrot.slane %v181, 6
    %s221 = scalar_lea.vmem %s2, 88
    %v222 = vld [vmem:[%s221] sm:$0xff]
    %224 = vset.pattern.permute.xlu0 0
    %225 = vperm.xlu0 %224, %v222
    %v226 = vpop.permute.xlu0 %225
    %v228 = vmul.f32 %v226, %v219
    %v229 = vmul.f32 %v226, %v220
    %v230 = vadd.f32 %v217, %v228
    %v231 = vadd.f32 %v218, %v229
    %232 = vrot.lane.b32.xlu0 %v30, 1
    %v233 = vpop.permute.xlu0 %232
    %234 = vrot.lane.b32.xlu0 %v31, 1
    %v235 = vpop.permute.xlu0 %234
    %vm236 = vcmp.lt.s32.totalorder %v51, 1
    %v237 = vsel %vm236, %v233, %v235
    %v238 = vsel %vm236, %v235, %v233
    %s239 = scalar_lea.vmem %s1, 48
    %v240 = vld [vmem:[%s239] sm:$0xff]
    %v241 = vld [vmem:[%s239 + $0x8] sm:$0xff]
    %v242 = vmul.f32 %v238, %v240
    %v243 = vmul.f32 %v237, %v241
    %s244 = scalar_lea.vmem %s2, 96
    %v245 = vld [vmem:[%s244] sm:$0xff]
    %247 = vset.pattern.permute.xlu0 0
    %248 = vperm.xlu0 %247, %v245
    %v249 = vpop.permute.xlu0 %248
    %v251 = vmul.f32 %v249, %v242
    %v252 = vmul.f32 %v249, %v243
    %v253 = vadd.f32 %v230, %v251
    %v254 = vadd.f32 %v231, %v252
    %v255 = vrot.slane %v242, 2
    %v256 = vrot.slane %v243, 2
    %s257 = scalar_lea.vmem %s2, 104
    %v258 = vld [vmem:[%s257] sm:$0xff]
    %260 = vset.pattern.permute.xlu0 0
    %261 = vperm.xlu0 %260, %v258
    %v262 = vpop.permute.xlu0 %261
    %v264 = vmul.f32 %v262, %v255
    %v265 = vmul.f32 %v262, %v256
    %v266 = vadd.f32 %v253, %v264
    %v267 = vadd.f32 %v254, %v265
    %v268 = vrot.slane %v242, 4
    %v269 = vrot.slane %v243, 4
    %s270 = scalar_lea.vmem %s2, 112
    %v271 = vld [vmem:[%s270] sm:$0xff]
    %273 = vset.pattern.permute.xlu0 0
    %274 = vperm.xlu0 %273, %v271
    %v275 = vpop.permute.xlu0 %274
    %v277 = vmul.f32 %v275, %v268
    %v278 = vmul.f32 %v275, %v269
    %v279 = vadd.f32 %v266, %v277
    %v280 = vadd.f32 %v267, %v278
    %v281 = vrot.slane %v242, 6
    %v282 = vrot.slane %v243, 6
    %s283 = scalar_lea.vmem %s2, 120
    %v284 = vld [vmem:[%s283] sm:$0xff]
    %286 = vset.pattern.permute.xlu0 0
    %287 = vperm.xlu0 %286, %v284
    %v288 = vpop.permute.xlu0 %287
    %v290 = vmul.f32 %v288, %v281
    %v291 = vmul.f32 %v288, %v282
    %v292 = vadd.f32 %v279, %v290
    %v293 = vadd.f32 %v280, %v291
    %s294 = scalar_lea.vmem %s2, 128
    %v295 = vld [vmem:[%s294] sm:$0xff]
    %297 = vset.pattern.permute.xlu0 0
    %298 = vperm.xlu0 %297, %v295
    %v299 = vpop.permute.xlu0 %298
    %v301 = vmul.f32 %v299, %v30
    %v302 = vmul.f32 %v299, %v31
    %v303 = vadd.f32 %v292, %v301
    %v304 = vadd.f32 %v293, %v302
    %v305 = vrot.slane %v30, 2
    %v306 = vrot.slane %v31, 2
    %s307 = scalar_lea.vmem %s2, 136
    %v308 = vld [vmem:[%s307] sm:$0xff]
    %310 = vset.pattern.permute.xlu0 0
    %311 = vperm.xlu0 %310, %v308
    %v312 = vpop.permute.xlu0 %311
    %v314 = vmul.f32 %v312, %v305
    %v315 = vmul.f32 %v312, %v306
    %v316 = vadd.f32 %v303, %v314
    %v317 = vadd.f32 %v304, %v315
    %v318 = vrot.slane %v30, 4
    %v319 = vrot.slane %v31, 4
    %s320 = scalar_lea.vmem %s2, 144
    %v321 = vld [vmem:[%s320] sm:$0xff]
    %323 = vset.pattern.permute.xlu0 0
    %324 = vperm.xlu0 %323, %v321
    %v325 = vpop.permute.xlu0 %324
    %v327 = vmul.f32 %v325, %v318
    %v328 = vmul.f32 %v325, %v319
    %v329 = vadd.f32 %v316, %v327
    %v330 = vadd.f32 %v317, %v328
    %v331 = vrot.slane %v30, 6
    %v332 = vrot.slane %v31, 6
    %s333 = scalar_lea.vmem %s2, 152
    %v334 = vld [vmem:[%s333] sm:$0xff]
    %336 = vset.pattern.permute.xlu0 0
    %337 = vperm.xlu0 %336, %v334
    %v338 = vpop.permute.xlu0 %337
    %v340 = vmul.f32 %v338, %v331
    %v341 = vmul.f32 %v338, %v332
    %v342 = vadd.f32 %v329, %v340
    %v343 = vadd.f32 %v330, %v341
    %344 = vrot.lane.b32.xlu0 %v30, 127
    %v345 = vpop.permute.xlu0 %344
    %346 = vrot.lane.b32.xlu0 %v31, 127
    %v347 = vpop.permute.xlu0 %346
    %vm348 = vcmp.lt.s32.totalorder %v51, 127
    %v349 = vsel %vm348, %v345, %v347
    %v350 = vsel %vm348, %v347, %v345
    %s351 = scalar_lea.vmem %s1, 80
    %v352 = vld [vmem:[%s351] sm:$0xff]
    %v353 = vld [vmem:[%s351 + $0x8] sm:$0xff]
    %v354 = vmul.f32 %v349, %v352
    %v355 = vmul.f32 %v350, %v353
    %s356 = scalar_lea.vmem %s2, 160
    %v357 = vld [vmem:[%s356] sm:$0xff]
    %359 = vset.pattern.permute.xlu0 0
    %360 = vperm.xlu0 %359, %v357
    %v361 = vpop.permute.xlu0 %360
    %v363 = vmul.f32 %v361, %v354
    %v364 = vmul.f32 %v361, %v355
    %v365 = vadd.f32 %v342, %v363
    %v366 = vadd.f32 %v343, %v364
    %v367 = vrot.slane %v354, 2
    %v368 = vrot.slane %v355, 2
    %s369 = scalar_lea.vmem %s2, 168
    %v370 = vld [vmem:[%s369] sm:$0xff]
    %372 = vset.pattern.permute.xlu0 0
    %373 = vperm.xlu0 %372, %v370
    %v374 = vpop.permute.xlu0 %373
    %v376 = vmul.f32 %v374, %v367
    %v377 = vmul.f32 %v374, %v368
    %v378 = vadd.f32 %v365, %v376
    %v379 = vadd.f32 %v366, %v377
    %v380 = vrot.slane %v354, 4
    %v381 = vrot.slane %v355, 4
    %s382 = scalar_lea.vmem %s2, 176
    %v383 = vld [vmem:[%s382] sm:$0xff]
    %385 = vset.pattern.permute.xlu0 0
    %386 = vperm.xlu0 %385, %v383
    %v387 = vpop.permute.xlu0 %386
    %v389 = vmul.f32 %v387, %v380
    %v390 = vmul.f32 %v387, %v381
    %v391 = vadd.f32 %v378, %v389
    %v392 = vadd.f32 %v379, %v390
    %v393 = vrot.slane %v354, 6
    %v394 = vrot.slane %v355, 6
    %s395 = scalar_lea.vmem %s2, 184
    %v396 = vld [vmem:[%s395] sm:$0xff]
    %398 = vset.pattern.permute.xlu0 0
    %399 = vperm.xlu0 %398, %v396
    %v400 = vpop.permute.xlu0 %399
    %v402 = vmul.f32 %v400, %v393
    %v403 = vmul.f32 %v400, %v394
    %v404 = vadd.f32 %v391, %v402
    %v405 = vadd.f32 %v392, %v403
    %406 = vrot.lane.b32.xlu0 %v30, 113
    %v407 = vpop.permute.xlu0 %406
    %408 = vrot.lane.b32.xlu0 %v31, 113
    %v409 = vpop.permute.xlu0 %408
    %vm410 = vcmp.lt.s32.totalorder %v51, 113
    %v411 = vsel %vm410, %v407, %v409
    %v412 = vsel %vm410, %v409, %v407
    %s413 = scalar_lea.vmem %s1, 96
    %v414 = vld [vmem:[%s413] sm:$0xff]
    %v415 = vld [vmem:[%s413 + $0x8] sm:$0xff]
    %v416 = vmul.f32 %v411, %v414
    %v417 = vmul.f32 %v412, %v415
    %s418 = scalar_lea.vmem %s2, 192
    %v419 = vld [vmem:[%s418] sm:$0xff]
    %421 = vset.pattern.permute.xlu0 0
    %422 = vperm.xlu0 %421, %v419
    %v423 = vpop.permute.xlu0 %422
    %v425 = vmul.f32 %v423, %v416
    %v426 = vmul.f32 %v423, %v417
    %v427 = vadd.f32 %v404, %v425
    %v428 = vadd.f32 %v405, %v426
    %v429 = vrot.slane %v416, 2
    %v430 = vrot.slane %v417, 2
    %s431 = scalar_lea.vmem %s2, 200
    %v432 = vld [vmem:[%s431] sm:$0xff]
    %434 = vset.pattern.permute.xlu0 0
    %435 = vperm.xlu0 %434, %v432
    %v436 = vpop.permute.xlu0 %435
    %v438 = vmul.f32 %v436, %v429
    %v439 = vmul.f32 %v436, %v430
    %v440 = vadd.f32 %v427, %v438
    %v441 = vadd.f32 %v428, %v439
    %v442 = vrot.slane %v416, 4
    %v443 = vrot.slane %v417, 4
    %s444 = scalar_lea.vmem %s2, 208
    %v445 = vld [vmem:[%s444] sm:$0xff]
    %447 = vset.pattern.permute.xlu0 0
    %448 = vperm.xlu0 %447, %v445
    %v449 = vpop.permute.xlu0 %448
    %v451 = vmul.f32 %v449, %v442
    %v452 = vmul.f32 %v449, %v443
    %v453 = vadd.f32 %v440, %v451
    %v454 = vadd.f32 %v441, %v452
    %v455 = vrot.slane %v416, 6
    %v456 = vrot.slane %v417, 6
    %s457 = scalar_lea.vmem %s2, 216
    %v458 = vld [vmem:[%s457] sm:$0xff]
    %460 = vset.pattern.permute.xlu0 0
    %461 = vperm.xlu0 %460, %v458
    %v462 = vpop.permute.xlu0 %461
    %v464 = vmul.f32 %v462, %v455
    %v465 = vmul.f32 %v462, %v456
    %v466 = vadd.f32 %v453, %v464
    %v467 = vadd.f32 %v454, %v465
    %468 = vrot.lane.b32.xlu0 %v30, 112
    %v469 = vpop.permute.xlu0 %468
    %470 = vrot.lane.b32.xlu0 %v31, 112
    %v471 = vpop.permute.xlu0 %470
    %vm472 = vcmp.lt.s32.totalorder %v51, 112
    %v473 = vsel %vm472, %v469, %v471
    %v474 = vsel %vm472, %v471, %v469
    %s475 = scalar_lea.vmem %s1, 112
    %v476 = vld [vmem:[%s475] sm:$0xff]
    %v477 = vld [vmem:[%s475 + $0x8] sm:$0xff]
    %v478 = vmul.f32 %v473, %v476
    %v479 = vmul.f32 %v474, %v477
    %s480 = scalar_lea.vmem %s2, 224
    %v481 = vld [vmem:[%s480] sm:$0xff]
    %483 = vset.pattern.permute.xlu0 0
    %484 = vperm.xlu0 %483, %v481
    %v485 = vpop.permute.xlu0 %484
    %v487 = vmul.f32 %v485, %v478
    %v488 = vmul.f32 %v485, %v479
    %v489 = vadd.f32 %v466, %v487
    %v490 = vadd.f32 %v467, %v488
    %v491 = vrot.slane %v478, 2
    %v492 = vrot.slane %v479, 2
    %s493 = scalar_lea.vmem %s2, 232
    %v494 = vld [vmem:[%s493] sm:$0xff]
    %496 = vset.pattern.permute.xlu0 0
    %497 = vperm.xlu0 %496, %v494
    %v498 = vpop.permute.xlu0 %497
    %v500 = vmul.f32 %v498, %v491
    %v501 = vmul.f32 %v498, %v492
    %v502 = vadd.f32 %v489, %v500
    %v503 = vadd.f32 %v490, %v501
    %v504 = vrot.slane %v478, 4
    %v505 = vrot.slane %v479, 4
    %s506 = scalar_lea.vmem %s2, 240
    %v507 = vld [vmem:[%s506] sm:$0xff]
    %509 = vset.pattern.permute.xlu0 0
    %510 = vperm.xlu0 %509, %v507
    %v511 = vpop.permute.xlu0 %510
    %v513 = vmul.f32 %v511, %v504
    %v514 = vmul.f32 %v511, %v505
    %v515 = vadd.f32 %v502, %v513
    %v516 = vadd.f32 %v503, %v514
    %v517 = vrot.slane %v478, 6
    %v518 = vrot.slane %v479, 6
    %s519 = scalar_lea.vmem %s2, 248
    %v520 = vld [vmem:[%s519] sm:$0xff]
    %522 = vset.pattern.permute.xlu0 0
    %523 = vperm.xlu0 %522, %v520
    %v524 = vpop.permute.xlu0 %523
    %v526 = vmul.f32 %v524, %v517
    %v527 = vmul.f32 %v524, %v518
    %v528 = vadd.f32 %v515, %v526
    %v529 = vadd.f32 %v516, %v527
    %530 = vrot.lane.b32.xlu0 %v30, 111
    %v531 = vpop.permute.xlu0 %530
    %532 = vrot.lane.b32.xlu0 %v31, 111
    %v533 = vpop.permute.xlu0 %532
    %vm534 = vcmp.lt.s32.totalorder %v51, 111
    %v535 = vsel %vm534, %v531, %v533
    %v536 = vsel %vm534, %v533, %v531
    %s537 = scalar_lea.vmem %s1, 128
    %v538 = vld [vmem:[%s537] sm:$0xff]
    %v539 = vld [vmem:[%s537 + $0x8] sm:$0xff]
    %v540 = vmul.f32 %v535, %v538
    %v541 = vmul.f32 %v536, %v539
    %s542 = scalar_lea.vmem %s2, 256
    %v543 = vld [vmem:[%s542] sm:$0xff]
    %545 = vset.pattern.permute.xlu0 0
    %546 = vperm.xlu0 %545, %v543
    %v547 = vpop.permute.xlu0 %546
    %v549 = vmul.f32 %v547, %v540
    %v550 = vmul.f32 %v547, %v541
    %v551 = vadd.f32 %v528, %v549
    %v552 = vadd.f32 %v529, %v550
    %v553 = vrot.slane %v540, 2
    %v554 = vrot.slane %v541, 2
    %s555 = scalar_lea.vmem %s2, 264
    %v556 = vld [vmem:[%s555] sm:$0xff]
    %558 = vset.pattern.permute.xlu0 0
    %559 = vperm.xlu0 %558, %v556
    %v560 = vpop.permute.xlu0 %559
    %v562 = vmul.f32 %v560, %v553
    %v563 = vmul.f32 %v560, %v554
    %v564 = vadd.f32 %v551, %v562
    %v565 = vadd.f32 %v552, %v563
    %v566 = vrot.slane %v540, 4
    %v567 = vrot.slane %v541, 4
    %s568 = scalar_lea.vmem %s2, 272
    %v569 = vld [vmem:[%s568] sm:$0xff]
    %571 = vset.pattern.permute.xlu0 0
    %572 = vperm.xlu0 %571, %v569
    %v573 = vpop.permute.xlu0 %572
    %v575 = vmul.f32 %v573, %v566
    %v576 = vmul.f32 %v573, %v567
    %v577 = vadd.f32 %v564, %v575
    %v578 = vadd.f32 %v565, %v576
    %v579 = vrot.slane %v540, 6
    %v580 = vrot.slane %v541, 6
    %s581 = scalar_lea.vmem %s2, 280
    %v582 = vld [vmem:[%s581] sm:$0xff]
    %584 = vset.pattern.permute.xlu0 0
    %585 = vperm.xlu0 %584, %v582
    %v586 = vpop.permute.xlu0 %585
    %v588 = vmul.f32 %v586, %v579
    %v589 = vmul.f32 %v586, %v580
    %v590 = vadd.f32 %v577, %v588
    %v591 = vadd.f32 %v578, %v589
    %v592 = vadd.f32 %v590, %v591
    %593 = vadd.xlane.f32.xlu0 %v592
    %v594 = vpop.xlane.xlu0 %593
    %v595 = vrot.slane %v594, 1
    %v596 = vrot.slane %v594, 7
    %v597 = vadd.s32 %v45, 1
    %vm598 = vcmp.lt.s32.totalorder %v597, 2
    %v599 = vsel %vm598, %v595, %v596
    %v600 = vadd.f32 %v594, %v599
    %v601 = vmul.f32 %v600, 0.001953125
    %603 = vset.pattern.permute.xlu0 0
    %604 = vperm.xlu0 %603, %v601
    %v605 = vpop.permute.xlu0 %604
    %v607 = vsub.f32 %v590, %v605
    %v608 = vsub.f32 %v591, %v605
    %v609 = vmul.f32 %v607, %v607
    %v610 = vmul.f32 %v608, %v608
    %v611 = vadd.f32 %v609, %v610
    %612 = vadd.xlane.f32.xlu0 %v611
    %v613 = vpop.xlane.xlu0 %612
    %v614 = vrot.slane %v613, 1
    %v615 = vrot.slane %v613, 7
    %v616 = vsel %vm598, %v614, %v615
    %v617 = vadd.f32 %v613, %v616
    %v618 = vmul.f32 %v617, 0.001953125
    %v619 = vld [vmem:[%s3] sm:$0xff]
    %v620 = vadd.f32 %v618, 1e-05
    %v621 = vrsqrt.pop %v620
    %v622 = vmul.f32 %v619, %v621
    %624 = vset.pattern.permute.xlu0 0
    %625 = vperm.xlu0 %624, %v622
    %v626 = vpop.permute.xlu0 %625
    %v628 = vmul.f32 %v607, %v626
    %v629 = vmul.f32 %v608, %v626
    %v630 = vld [vmem:[%s4] sm:$0xff]
    %632 = vset.pattern.permute.xlu0 0
    %633 = vperm.xlu0 %632, %v630
    %v634 = vpop.permute.xlu0 %633
    %v636 = vadd.f32 %v628, %v634
    %v637 = vadd.f32 %v629, %v634
    %v638 = vmax.f32 %v636, 0.0
    %v639 = vmax.f32 %v637, 0.0
    %640 = vrot.lane.b32.xlu0 %v638, 17
    %v641 = vpop.permute.xlu0 %640
    %642 = vrot.lane.b32.xlu0 %v639, 17
    %v643 = vpop.permute.xlu0 %642
    %v644 = vsel %vm52, %v641, %v643
    %v645 = vsel %vm52, %v643, %v641
    %v646 = vmul.f32 %v645, %v55
    %v647 = vmul.f32 %v644, %v56
    %v648 = vld [vmem:[%s5] sm:$0xff]
    %650 = vset.pattern.permute.xlu0 0
    %651 = vperm.xlu0 %650, %v648
    %v652 = vpop.permute.xlu0 %651
    %v654 = vmul.f32 %v652, %v646
    %v655 = vmul.f32 %v652, %v647
    %v656 = vadd.f32 %v654, 0.0
    %v657 = vadd.f32 %v655, 0.0
    %v658 = vrot.slane %v646, 2
    %v659 = vrot.slane %v647, 2
    %s660 = scalar_lea.vmem %s5, 8
    %v661 = vld [vmem:[%s660] sm:$0xff]
    %663 = vset.pattern.permute.xlu0 0
    %664 = vperm.xlu0 %663, %v661
    %v665 = vpop.permute.xlu0 %664
    %v667 = vmul.f32 %v665, %v658
    %v668 = vmul.f32 %v665, %v659
    %v669 = vadd.f32 %v656, %v667
    %v670 = vadd.f32 %v657, %v668
    %v671 = vrot.slane %v646, 4
    %v672 = vrot.slane %v647, 4
    %s673 = scalar_lea.vmem %s5, 16
    %v674 = vld [vmem:[%s673] sm:$0xff]
    %676 = vset.pattern.permute.xlu0 0
    %677 = vperm.xlu0 %676, %v674
    %v678 = vpop.permute.xlu0 %677
    %v680 = vmul.f32 %v678, %v671
    %v681 = vmul.f32 %v678, %v672
    %v682 = vadd.f32 %v669, %v680
    %v683 = vadd.f32 %v670, %v681
    %v684 = vrot.slane %v646, 6
    %v685 = vrot.slane %v647, 6
    %s686 = scalar_lea.vmem %s5, 24
    %v687 = vld [vmem:[%s686] sm:$0xff]
    %689 = vset.pattern.permute.xlu0 0
    %690 = vperm.xlu0 %689, %v687
    %v691 = vpop.permute.xlu0 %690
    %v693 = vmul.f32 %v691, %v684
    %v694 = vmul.f32 %v691, %v685
    %v695 = vadd.f32 %v682, %v693
    %v696 = vadd.f32 %v683, %v694
    %697 = vrot.lane.b32.xlu0 %v638, 16
    %v698 = vpop.permute.xlu0 %697
    %699 = vrot.lane.b32.xlu0 %v639, 16
    %v700 = vpop.permute.xlu0 %699
    %v701 = vsel %vm112, %v698, %v700
    %v702 = vsel %vm112, %v700, %v698
    %v703 = vmul.f32 %v702, %v116
    %v704 = vmul.f32 %v701, %v117
    %s705 = scalar_lea.vmem %s5, 32
    %v706 = vld [vmem:[%s705] sm:$0xff]
    %708 = vset.pattern.permute.xlu0 0
    %709 = vperm.xlu0 %708, %v706
    %v710 = vpop.permute.xlu0 %709
    %v712 = vmul.f32 %v710, %v703
    %v713 = vmul.f32 %v710, %v704
    %v714 = vadd.f32 %v695, %v712
    %v715 = vadd.f32 %v696, %v713
    %v716 = vrot.slane %v703, 2
    %v717 = vrot.slane %v704, 2
    %s718 = scalar_lea.vmem %s5, 40
    %v719 = vld [vmem:[%s718] sm:$0xff]
    %721 = vset.pattern.permute.xlu0 0
    %722 = vperm.xlu0 %721, %v719
    %v723 = vpop.permute.xlu0 %722
    %v725 = vmul.f32 %v723, %v716
    %v726 = vmul.f32 %v723, %v717
    %v727 = vadd.f32 %v714, %v725
    %v728 = vadd.f32 %v715, %v726
    %v729 = vrot.slane %v703, 4
    %v730 = vrot.slane %v704, 4
    %s731 = scalar_lea.vmem %s5, 48
    %v732 = vld [vmem:[%s731] sm:$0xff]
    %734 = vset.pattern.permute.xlu0 0
    %735 = vperm.xlu0 %734, %v732
    %v736 = vpop.permute.xlu0 %735
    %v738 = vmul.f32 %v736, %v729
    %v739 = vmul.f32 %v736, %v730
    %v740 = vadd.f32 %v727, %v738
    %v741 = vadd.f32 %v728, %v739
    %v742 = vrot.slane %v703, 6
    %v743 = vrot.slane %v704, 6
    %s744 = scalar_lea.vmem %s5, 56
    %v745 = vld [vmem:[%s744] sm:$0xff]
    %747 = vset.pattern.permute.xlu0 0
    %748 = vperm.xlu0 %747, %v745
    %v749 = vpop.permute.xlu0 %748
    %v751 = vmul.f32 %v749, %v742
    %v752 = vmul.f32 %v749, %v743
    %v753 = vadd.f32 %v740, %v751
    %v754 = vadd.f32 %v741, %v752
    %755 = vrot.lane.b32.xlu0 %v638, 15
    %v756 = vpop.permute.xlu0 %755
    %757 = vrot.lane.b32.xlu0 %v639, 15
    %v758 = vpop.permute.xlu0 %757
    %v759 = vsel %vm174, %v756, %v758
    %v760 = vsel %vm174, %v758, %v756
    %v761 = vmul.f32 %v760, %v178
    %v762 = vmul.f32 %v759, %v179
    %s763 = scalar_lea.vmem %s5, 64
    %v764 = vld [vmem:[%s763] sm:$0xff]
    %766 = vset.pattern.permute.xlu0 0
    %767 = vperm.xlu0 %766, %v764
    %v768 = vpop.permute.xlu0 %767
    %v770 = vmul.f32 %v768, %v761
    %v771 = vmul.f32 %v768, %v762
    %v772 = vadd.f32 %v753, %v770
    %v773 = vadd.f32 %v754, %v771
    %v774 = vrot.slane %v761, 2
    %v775 = vrot.slane %v762, 2
    %s776 = scalar_lea.vmem %s5, 72
    %v777 = vld [vmem:[%s776] sm:$0xff]
    %779 = vset.pattern.permute.xlu0 0
    %780 = vperm.xlu0 %779, %v777
    %v781 = vpop.permute.xlu0 %780
    %v783 = vmul.f32 %v781, %v774
    %v784 = vmul.f32 %v781, %v775
    %v785 = vadd.f32 %v772, %v783
    %v786 = vadd.f32 %v773, %v784
    %v787 = vrot.slane %v761, 4
    %v788 = vrot.slane %v762, 4
    %s789 = scalar_lea.vmem %s5, 80
    %v790 = vld [vmem:[%s789] sm:$0xff]
    %792 = vset.pattern.permute.xlu0 0
    %793 = vperm.xlu0 %792, %v790
    %v794 = vpop.permute.xlu0 %793
    %v796 = vmul.f32 %v794, %v787
    %v797 = vmul.f32 %v794, %v788
    %v798 = vadd.f32 %v785, %v796
    %v799 = vadd.f32 %v786, %v797
    %v800 = vrot.slane %v761, 6
    %v801 = vrot.slane %v762, 6
    %s802 = scalar_lea.vmem %s5, 88
    %v803 = vld [vmem:[%s802] sm:$0xff]
    %805 = vset.pattern.permute.xlu0 0
    %806 = vperm.xlu0 %805, %v803
    %v807 = vpop.permute.xlu0 %806
    %v809 = vmul.f32 %v807, %v800
    %v810 = vmul.f32 %v807, %v801
    %v811 = vadd.f32 %v798, %v809
    %v812 = vadd.f32 %v799, %v810
    %813 = vrot.lane.b32.xlu0 %v638, 1
    %v814 = vpop.permute.xlu0 %813
    %815 = vrot.lane.b32.xlu0 %v639, 1
    %v816 = vpop.permute.xlu0 %815
    %v817 = vsel %vm236, %v814, %v816
    %v818 = vsel %vm236, %v816, %v814
    %v819 = vmul.f32 %v818, %v240
    %v820 = vmul.f32 %v817, %v241
    %s821 = scalar_lea.vmem %s5, 96
    %v822 = vld [vmem:[%s821] sm:$0xff]
    %824 = vset.pattern.permute.xlu0 0
    %825 = vperm.xlu0 %824, %v822
    %v826 = vpop.permute.xlu0 %825
    %v828 = vmul.f32 %v826, %v819
    %v829 = vmul.f32 %v826, %v820
    %v830 = vadd.f32 %v811, %v828
    %v831 = vadd.f32 %v812, %v829
    %v832 = vrot.slane %v819, 2
    %v833 = vrot.slane %v820, 2
    %s834 = scalar_lea.vmem %s5, 104
    %v835 = vld [vmem:[%s834] sm:$0xff]
    %837 = vset.pattern.permute.xlu0 0
    %838 = vperm.xlu0 %837, %v835
    %v839 = vpop.permute.xlu0 %838
    %v841 = vmul.f32 %v839, %v832
    %v842 = vmul.f32 %v839, %v833
    %v843 = vadd.f32 %v830, %v841
    %v844 = vadd.f32 %v831, %v842
    %v845 = vrot.slane %v819, 4
    %v846 = vrot.slane %v820, 4
    %s847 = scalar_lea.vmem %s5, 112
    %v848 = vld [vmem:[%s847] sm:$0xff]
    %850 = vset.pattern.permute.xlu0 0
    %851 = vperm.xlu0 %850, %v848
    %v852 = vpop.permute.xlu0 %851
    %v854 = vmul.f32 %v852, %v845
    %v855 = vmul.f32 %v852, %v846
    %v856 = vadd.f32 %v843, %v854
    %v857 = vadd.f32 %v844, %v855
    %v858 = vrot.slane %v819, 6
    %v859 = vrot.slane %v820, 6
    %s860 = scalar_lea.vmem %s5, 120
    %v861 = vld [vmem:[%s860] sm:$0xff]
    %863 = vset.pattern.permute.xlu0 0
    %864 = vperm.xlu0 %863, %v861
    %v865 = vpop.permute.xlu0 %864
    %v867 = vmul.f32 %v865, %v858
    %v868 = vmul.f32 %v865, %v859
    %v869 = vadd.f32 %v856, %v867
    %v870 = vadd.f32 %v857, %v868
    %s871 = scalar_lea.vmem %s5, 128
    %v872 = vld [vmem:[%s871] sm:$0xff]
    %874 = vset.pattern.permute.xlu0 0
    %875 = vperm.xlu0 %874, %v872
    %v876 = vpop.permute.xlu0 %875
    %v878 = vmul.f32 %v876, %v638
    %v879 = vmul.f32 %v876, %v639
    %v880 = vadd.f32 %v869, %v878
    %v881 = vadd.f32 %v870, %v879
    %v882 = vrot.slane %v638, 2
    %v883 = vrot.slane %v639, 2
    %s884 = scalar_lea.vmem %s5, 136
    %v885 = vld [vmem:[%s884] sm:$0xff]
    %887 = vset.pattern.permute.xlu0 0
    %888 = vperm.xlu0 %887, %v885
    %v889 = vpop.permute.xlu0 %888
    %v891 = vmul.f32 %v889, %v882
    %v892 = vmul.f32 %v889, %v883
    %v893 = vadd.f32 %v880, %v891
    %v894 = vadd.f32 %v881, %v892
    %v895 = vrot.slane %v638, 4
    %v896 = vrot.slane %v639, 4
    %s897 = scalar_lea.vmem %s5, 144
    %v898 = vld [vmem:[%s897] sm:$0xff]
    %900 = vset.pattern.permute.xlu0 0
    %901 = vperm.xlu0 %900, %v898
    %v902 = vpop.permute.xlu0 %901
    %v904 = vmul.f32 %v902, %v895
    %v905 = vmul.f32 %v902, %v896
    %v906 = vadd.f32 %v893, %v904
    %v907 = vadd.f32 %v894, %v905
    %v908 = vrot.slane %v638, 6
    %v909 = vrot.slane %v639, 6
    %s910 = scalar_lea.vmem %s5, 152
    %v911 = vld [vmem:[%s910] sm:$0xff]
    %913 = vset.pattern.permute.xlu0 0
    %914 = vperm.xlu0 %913, %v911
    %v915 = vpop.permute.xlu0 %914
    %v917 = vmul.f32 %v915, %v908
    %v918 = vmul.f32 %v915, %v909
    %v919 = vadd.f32 %v906, %v917
    %v920 = vadd.f32 %v907, %v918
    %921 = vrot.lane.b32.xlu0 %v638, 127
    %v922 = vpop.permute.xlu0 %921
    %923 = vrot.lane.b32.xlu0 %v639, 127
    %v924 = vpop.permute.xlu0 %923
    %v925 = vsel %vm348, %v922, %v924
    %v926 = vsel %vm348, %v924, %v922
    %v927 = vmul.f32 %v925, %v352
    %v928 = vmul.f32 %v926, %v353
    %s929 = scalar_lea.vmem %s5, 160
    %v930 = vld [vmem:[%s929] sm:$0xff]
    %932 = vset.pattern.permute.xlu0 0
    %933 = vperm.xlu0 %932, %v930
    %v934 = vpop.permute.xlu0 %933
    %v936 = vmul.f32 %v934, %v927
    %v937 = vmul.f32 %v934, %v928
    %v938 = vadd.f32 %v919, %v936
    %v939 = vadd.f32 %v920, %v937
    %v940 = vrot.slane %v927, 2
    %v941 = vrot.slane %v928, 2
    %s942 = scalar_lea.vmem %s5, 168
    %v943 = vld [vmem:[%s942] sm:$0xff]
    %945 = vset.pattern.permute.xlu0 0
    %946 = vperm.xlu0 %945, %v943
    %v947 = vpop.permute.xlu0 %946
    %v949 = vmul.f32 %v947, %v940
    %v950 = vmul.f32 %v947, %v941
    %v951 = vadd.f32 %v938, %v949
    %v952 = vadd.f32 %v939, %v950
    %v953 = vrot.slane %v927, 4
    %v954 = vrot.slane %v928, 4
    %s955 = scalar_lea.vmem %s5, 176
    %v956 = vld [vmem:[%s955] sm:$0xff]
    %958 = vset.pattern.permute.xlu0 0
    %959 = vperm.xlu0 %958, %v956
    %v960 = vpop.permute.xlu0 %959
    %v962 = vmul.f32 %v960, %v953
    %v963 = vmul.f32 %v960, %v954
    %v964 = vadd.f32 %v951, %v962
    %v965 = vadd.f32 %v952, %v963
    %v966 = vrot.slane %v927, 6
    %v967 = vrot.slane %v928, 6
    %s968 = scalar_lea.vmem %s5, 184
    %v969 = vld [vmem:[%s968] sm:$0xff]
    %971 = vset.pattern.permute.xlu0 0
    %972 = vperm.xlu0 %971, %v969
    %v973 = vpop.permute.xlu0 %972
    %v975 = vmul.f32 %v973, %v966
    %v976 = vmul.f32 %v973, %v967
    %v977 = vadd.f32 %v964, %v975
    %v978 = vadd.f32 %v965, %v976
    %979 = vrot.lane.b32.xlu0 %v638, 113
    %v980 = vpop.permute.xlu0 %979
    %981 = vrot.lane.b32.xlu0 %v639, 113
    %v982 = vpop.permute.xlu0 %981
    %v983 = vsel %vm410, %v980, %v982
    %v984 = vsel %vm410, %v982, %v980
    %v985 = vmul.f32 %v983, %v414
    %v986 = vmul.f32 %v984, %v415
    %s987 = scalar_lea.vmem %s5, 192
    %v988 = vld [vmem:[%s987] sm:$0xff]
    %990 = vset.pattern.permute.xlu0 0
    %991 = vperm.xlu0 %990, %v988
    %v992 = vpop.permute.xlu0 %991
    %v994 = vmul.f32 %v992, %v985
    %v995 = vmul.f32 %v992, %v986
    %v996 = vadd.f32 %v977, %v994
    %v997 = vadd.f32 %v978, %v995
    %v998 = vrot.slane %v985, 2
    %v999 = vrot.slane %v986, 2
    %s1000 = scalar_lea.vmem %s5, 200
    %v1001 = vld [vmem:[%s1000] sm:$0xff]
    %1003 = vset.pattern.permute.xlu0 0
    %1004 = vperm.xlu0 %1003, %v1001
    %v1005 = vpop.permute.xlu0 %1004
    %v1007 = vmul.f32 %v1005, %v998
    %v1008 = vmul.f32 %v1005, %v999
    %v1009 = vadd.f32 %v996, %v1007
    %v1010 = vadd.f32 %v997, %v1008
    %v1011 = vrot.slane %v985, 4
    %v1012 = vrot.slane %v986, 4
    %s1013 = scalar_lea.vmem %s5, 208
    %v1014 = vld [vmem:[%s1013] sm:$0xff]
    %1016 = vset.pattern.permute.xlu0 0
    %1017 = vperm.xlu0 %1016, %v1014
    %v1018 = vpop.permute.xlu0 %1017
    %v1020 = vmul.f32 %v1018, %v1011
    %v1021 = vmul.f32 %v1018, %v1012
    %v1022 = vadd.f32 %v1009, %v1020
    %v1023 = vadd.f32 %v1010, %v1021
    %v1024 = vrot.slane %v985, 6
    %v1025 = vrot.slane %v986, 6
    %s1026 = scalar_lea.vmem %s5, 216
    %v1027 = vld [vmem:[%s1026] sm:$0xff]
    %1029 = vset.pattern.permute.xlu0 0
    %1030 = vperm.xlu0 %1029, %v1027
    %v1031 = vpop.permute.xlu0 %1030
    %v1033 = vmul.f32 %v1031, %v1024
    %v1034 = vmul.f32 %v1031, %v1025
    %v1035 = vadd.f32 %v1022, %v1033
    %v1036 = vadd.f32 %v1023, %v1034
    %1037 = vrot.lane.b32.xlu0 %v638, 112
    %v1038 = vpop.permute.xlu0 %1037
    %1039 = vrot.lane.b32.xlu0 %v639, 112
    %v1040 = vpop.permute.xlu0 %1039
    %v1041 = vsel %vm472, %v1038, %v1040
    %v1042 = vsel %vm472, %v1040, %v1038
    %v1043 = vmul.f32 %v1041, %v476
    %v1044 = vmul.f32 %v1042, %v477
    %s1045 = scalar_lea.vmem %s5, 224
    %v1046 = vld [vmem:[%s1045] sm:$0xff]
    %1048 = vset.pattern.permute.xlu0 0
    %1049 = vperm.xlu0 %1048, %v1046
    %v1050 = vpop.permute.xlu0 %1049
    %v1052 = vmul.f32 %v1050, %v1043
    %v1053 = vmul.f32 %v1050, %v1044
    %v1054 = vadd.f32 %v1035, %v1052
    %v1055 = vadd.f32 %v1036, %v1053
    %v1056 = vrot.slane %v1043, 2
    %v1057 = vrot.slane %v1044, 2
    %s1058 = scalar_lea.vmem %s5, 232
    %v1059 = vld [vmem:[%s1058] sm:$0xff]
    %1061 = vset.pattern.permute.xlu0 0
    %1062 = vperm.xlu0 %1061, %v1059
    %v1063 = vpop.permute.xlu0 %1062
    %v1065 = vmul.f32 %v1063, %v1056
    %v1066 = vmul.f32 %v1063, %v1057
    %v1067 = vadd.f32 %v1054, %v1065
    %v1068 = vadd.f32 %v1055, %v1066
    %v1069 = vrot.slane %v1043, 4
    %v1070 = vrot.slane %v1044, 4
    %s1071 = scalar_lea.vmem %s5, 240
    %v1072 = vld [vmem:[%s1071] sm:$0xff]
    %1074 = vset.pattern.permute.xlu0 0
    %1075 = vperm.xlu0 %1074, %v1072
    %v1076 = vpop.permute.xlu0 %1075
    %v1078 = vmul.f32 %v1076, %v1069
    %v1079 = vmul.f32 %v1076, %v1070
    %v1080 = vadd.f32 %v1067, %v1078
    %v1081 = vadd.f32 %v1068, %v1079
    %v1082 = vrot.slane %v1043, 6
    %v1083 = vrot.slane %v1044, 6
    %s1084 = scalar_lea.vmem %s5, 248
    %v1085 = vld [vmem:[%s1084] sm:$0xff]
    %1087 = vset.pattern.permute.xlu0 0
    %1088 = vperm.xlu0 %1087, %v1085
    %v1089 = vpop.permute.xlu0 %1088
    %v1091 = vmul.f32 %v1089, %v1082
    %v1092 = vmul.f32 %v1089, %v1083
    %v1093 = vadd.f32 %v1080, %v1091
    %v1094 = vadd.f32 %v1081, %v1092
    %1095 = vrot.lane.b32.xlu0 %v638, 111
    %v1096 = vpop.permute.xlu0 %1095
    %1097 = vrot.lane.b32.xlu0 %v639, 111
    %v1098 = vpop.permute.xlu0 %1097
    %v1099 = vsel %vm534, %v1096, %v1098
    %v1100 = vsel %vm534, %v1098, %v1096
    %v1101 = vmul.f32 %v1099, %v538
    %v1102 = vmul.f32 %v1100, %v539
    %s1103 = scalar_lea.vmem %s5, 256
    %v1104 = vld [vmem:[%s1103] sm:$0xff]
    %1106 = vset.pattern.permute.xlu0 0
    %1107 = vperm.xlu0 %1106, %v1104
    %v1108 = vpop.permute.xlu0 %1107
    %v1110 = vmul.f32 %v1108, %v1101
    %v1111 = vmul.f32 %v1108, %v1102
    %v1112 = vadd.f32 %v1093, %v1110
    %v1113 = vadd.f32 %v1094, %v1111
    %v1114 = vrot.slane %v1101, 2
    %v1115 = vrot.slane %v1102, 2
    %s1116 = scalar_lea.vmem %s5, 264
    %v1117 = vld [vmem:[%s1116] sm:$0xff]
    %1119 = vset.pattern.permute.xlu0 0
    %1120 = vperm.xlu0 %1119, %v1117
    %v1121 = vpop.permute.xlu0 %1120
    %v1123 = vmul.f32 %v1121, %v1114
    %v1124 = vmul.f32 %v1121, %v1115
    %v1125 = vadd.f32 %v1112, %v1123
    %v1126 = vadd.f32 %v1113, %v1124
    %v1127 = vrot.slane %v1101, 4
    %v1128 = vrot.slane %v1102, 4
    %s1129 = scalar_lea.vmem %s5, 272
    %v1130 = vld [vmem:[%s1129] sm:$0xff]
    %1132 = vset.pattern.permute.xlu0 0
    %1133 = vperm.xlu0 %1132, %v1130
    %v1134 = vpop.permute.xlu0 %1133
    %v1136 = vmul.f32 %v1134, %v1127
    %v1137 = vmul.f32 %v1134, %v1128
    %v1138 = vadd.f32 %v1125, %v1136
    %v1139 = vadd.f32 %v1126, %v1137
    %v1140 = vrot.slane %v1101, 6
    %v1141 = vrot.slane %v1102, 6
    %s1142 = scalar_lea.vmem %s5, 280
    %v1143 = vld [vmem:[%s1142] sm:$0xff]
    %1145 = vset.pattern.permute.xlu0 0
    %1146 = vperm.xlu0 %1145, %v1143
    %v1147 = vpop.permute.xlu0 %1146
    %v1149 = vmul.f32 %v1147, %v1140
    %v1150 = vmul.f32 %v1147, %v1141
    %v1151 = vadd.f32 %v1138, %v1149
    %v1152 = vadd.f32 %v1139, %v1150
    %v1153 = vadd.f32 %v1151, %v1152
    %1154 = vadd.xlane.f32.xlu0 %v1153
    %v1155 = vpop.xlane.xlu0 %1154
    %v1156 = vrot.slane %v1155, 1
    %v1157 = vrot.slane %v1155, 7
    %v1158 = vsel %vm598, %v1156, %v1157
    %v1159 = vadd.f32 %v1155, %v1158
    %v1160 = vmul.f32 %v1159, 0.001953125
    %1162 = vset.pattern.permute.xlu0 0
    %1163 = vperm.xlu0 %1162, %v1160
    %v1164 = vpop.permute.xlu0 %1163
    %v1166 = vsub.f32 %v1151, %v1164
    %v1167 = vsub.f32 %v1152, %v1164
    %v1168 = vmul.f32 %v1166, %v1166
    %v1169 = vmul.f32 %v1167, %v1167
    %v1170 = vadd.f32 %v1168, %v1169
    %1171 = vadd.xlane.f32.xlu0 %v1170
    %v1172 = vpop.xlane.xlu0 %1171
    %v1173 = vrot.slane %v1172, 1
    %v1174 = vrot.slane %v1172, 7
    %v1175 = vsel %vm598, %v1173, %v1174
    %v1176 = vadd.f32 %v1172, %v1175
    %v1177 = vmul.f32 %v1176, 0.001953125
    %v1178 = vld [vmem:[%s6] sm:$0xff]
    %v1179 = vadd.f32 %v1177, 1e-05
    %v1180 = vrsqrt.pop %v1179
    %v1181 = vmul.f32 %v1178, %v1180
    %1183 = vset.pattern.permute.xlu0 0
    %1184 = vperm.xlu0 %1183, %v1181
    %v1185 = vpop.permute.xlu0 %1184
    %v1187 = vmul.f32 %v1166, %v1185
    %v1188 = vmul.f32 %v1167, %v1185
    %v1189 = vld [vmem:[%s7] sm:$0xff]
    %1191 = vset.pattern.permute.xlu0 0
    %1192 = vperm.xlu0 %1191, %v1189
    %v1193 = vpop.permute.xlu0 %1192
    %v1195 = vadd.f32 %v1187, %v1193
    %v1196 = vadd.f32 %v1188, %v1193
    %v1197 = vadd.f32 %v30, %v1195
    %v1198 = vadd.f32 %v31, %v1196
    %v1199 = vmax.f32 %v1197, 0.0
    %v1200 = vmax.f32 %v1198, 0.0
    %1201 = vst [vmem:[#allocation2] sm:$0xff] %v1199
    %1202 = vst [vmem:[#allocation2 + $0x8] sm:$0xff] %v1200
    // Predicated region
    $region34: #{tpu_custom_call.1} parent=1 // pred_check
      _
    $region35: #{tpu_custom_call.1} parent=1 // pred_check_branch
      %1204 = sbr.rel (0) target = $region37
    $region36: #{tpu_custom_call.1} parent=1 // pred_region
      %s1206 = ssub.s32 256, 256
      %1207 = vsyncadd [#allocation3], %s1206
      %s1209 = sshll.u32 [#allocation2], 4
      %s1210 = int_to_ptr.vmem [resolvable:$true] %s1209
      %1212 = dma.vmem_to_hbm [thread:$0]  %s1210, 256, %s8, [#allocation3]
    $region37: #{tpu_custom_call.1} parent=1 // pred_fallthru
      _
    // Predicated region
    $region38: #{tpu_custom_call.1} parent=1 // pred_check
      _
    $region39: #{tpu_custom_call.1} parent=1 // pred_check_branch
      %1214 = sbr.rel (0) target = $region41
    $region40: #{tpu_custom_call.1} parent=1 // pred_region
      %1215 = dma.done [#allocation3], 256
    $region41: #{tpu_custom_call.1} parent=1 // pred_fallthru
      _
    %1216 = vsyncpa [#allocation3], 1

</llo_original>
